<compile_context>
chip_gen: v7x
topology: tpu7x:2x2x1
jax: 0.10.0
libtpu: 0.0.40
codegen_flags: <defaults>
</compile_context>

<pallas_src>
import jax
import jax.numpy as jnp
from jax import lax
from jax.experimental import pallas as pl
from jax.experimental.pallas import tpu as pltpu

# ----------------------------- model dims ---------------------------------
B = 2            # batch
L = 16           # win_size
C = 4            # input_c
D = 32           # d_model of attention encoder
F = 64           # ffn hidden
BL = B * L
EPS = 1e-5
LANES = 128      # lane-dense slab width


# --------------------------- weight-slab layout ----------------------------
# name: (row0, col0, rows, cols) inside the (SLAB_ROWS, 128) f32 slab.
LAYOUT = {
    # band A: rows 0-31
    "wqkv":  (0,   0, 32, 96),    # fused [q*inv_sqrt_d | k | v] weights (D, 3D)
    "wo":    (0,  96, 32, 32),    # attention output proj (D, D)
    # band B: rows 32-63
    "wf1":   (32,  0, 32, 64),    # FFN up (D, F)
    "wf2t":  (32, 64, 32, 64),    # FFN down, stored transposed (D, F)
    # band C: rows 64-95
    "mask":  (64,  0, 32, 32),    # additive block-diagonal attention mask (BL, BL)
    "w1t":   (64, 32, 32, 15),    # fc1 weight tiled over batch (BL, 15)
    "we":    (64, 64,  4, 32),    # embedding (C, D)
    "sel":   (68, 64,  2, 32),    # batch-selection matrix (B, BL)
    "w2a":   (70, 64, 15,  4),    # fc2 weight, x_rep part (15, 4)
    "w3":    (85, 64,  4,  2),    # fc3 weight (4, 2)
    "w2b":   (89, 64,  1,  4),    # fc2 weight, x_life part (1, 4)
    "bp":    (90, 64,  1,  1),    # c_out projection bias (1, 1)
    "be":    (64, 96,  1, 32),
    "bo":    (65, 96,  1, 32),
    "g1":    (66, 96,  1, 32),
    "beta1": (67, 96,  1, 32),
    "bf2":   (68, 96,  1, 32),
    "g2":    (69, 96,  1, 32),
    "beta2": (70, 96,  1, 32),
    "wpr":   (71, 96,  1, 32),    # c_out projection weight stored as a row (1, D)
    "b1":    (72, 96,  1, 15),
    "b2":    (73, 96,  1,  4),
    "b3":    (74, 96,  1,  2),
    # tail rows
    "bqkv":  (96,  0,  1, 96),
    "bf1":   (97,  0,  1, 64),
}

_max_row = max(r0 + h for (r0, _, h, _) in LAYOUT.values())
SLAB_ROWS = -(-_max_row // 8) * 8        # 104


def _check_layout():
    occ = [[0] * LANES for _ in range(SLAB_ROWS)]
    for name, (r0, c0, h, w) in LAYOUT.items():
        assert 0 <= r0 and r0 + h <= SLAB_ROWS, name
        assert 0 <= c0 and c0 + w <= LANES, name
        for r in range(r0, r0 + h):
            row = occ[r]
            for c in range(c0, c0 + w):
                assert row[c] == 0, ("slab overlap", name, r, c)
                row[c] = 1


_check_layout()


# ------------------------------- kernel ------------------------------------
def _layernorm(h, gamma, beta):
    m = jnp.mean(h, axis=-1, keepdims=True)
    v = jnp.mean((h - m) * (h - m), axis=-1, keepdims=True)
    return (h - m) * lax.rsqrt(v + EPS) * gamma + beta


def model_kernel(x_ref, xlife_ref, w_ref, out_ref):
    def W(name):
        r0, c0, h, w = LAYOUT[name]
        return w_ref[r0:r0 + h, c0:c0 + w]

    x = x_ref[...]                                                    # (C, BL) channel-major

    # --- embedding: h[n,d] = sum_c x[c,n] * we[c,d] ---
    h = lax.dot_general(x, W("we"), (((0,), (0,)), ((), ())),
                        preferred_element_type=jnp.float32) + W("be")      # (BL, D)

    # --- fused QKV (1/sqrt(D) already folded into Q weights/bias) ---
    qkv = jnp.dot(h, W("wqkv"), preferred_element_type=jnp.float32) + W("bqkv")  # (BL, 3D)
    q = qkv[:, 0:D]
    k = qkv[:, D:2 * D]
    v = qkv[:, 2 * D:3 * D]

    # --- batched self-attention, precomputed block-diagonal additive mask ---
    scores = lax.dot_general(q, k, (((1,), (1,)), ((), ())),
                             preferred_element_type=jnp.float32)            # (BL, BL)
    scores = scores + W("mask")
    scores = scores - jnp.max(scores, axis=-1, keepdims=True)
    p = jnp.exp(scores)
    p = p * pl.reciprocal(jnp.sum(p, axis=-1, keepdims=True), approx=True)
    attn = jnp.dot(p, v, preferred_element_type=jnp.float32)               # (BL, D)
    ao = jnp.dot(attn, W("wo"), preferred_element_type=jnp.float32) + W("bo")

    h = _layernorm(h + ao, W("g1"), W("beta1"))

    # --- FFN (down-proj weight stored transposed) ---
    ff = jnp.maximum(
        jnp.dot(h, W("wf1"), preferred_element_type=jnp.float32) + W("bf1"), 0.0)
    ff = lax.dot_general(ff, W("wf2t"), (((1,), (1,)), ((), ())),
                         preferred_element_type=jnp.float32) + W("bf2")
    h = _layernorm(h + ff, W("g2"), W("beta2"))

    # --- project D -> c_out=1 on VPU/XLU (no MXU round-trip for a 1-wide output) ---
    x_tf = jnp.sum(h * W("wpr"), axis=-1, keepdims=True) + W("bp")          # (BL, 1)

    # --- fc1 per batch via precomputed batch-selection matmul ---
    x_rep = jnp.maximum(
        jnp.dot(W("sel"), x_tf * W("w1t"), preferred_element_type=jnp.float32) + W("b1"),
        0.0)                                                                # (B, 15)

    # --- life feature: 5 * exp(x_life), read from SMEM scalars ---
    rowb = lax.broadcasted_iota(jnp.int32, (B, 1), 0)
    xl = jnp.zeros((B, 1), jnp.float32)
    for b in range(B):                                                      # static unroll
        xl = jnp.where(rowb == b, xlife_ref[b], xl)
    xl = 5.0 * jnp.exp(xl)                                                  # (B, 1)

    # --- fc2 over concat([x_rep, xlife]) (w2 split wrapper-side, no concat needed) ---
    h2 = jnp.maximum(
        jnp.dot(x_rep, W("w2a"), preferred_element_type=jnp.float32)
        + xl * W("w2b") + W("b2"), 0.0)                                     # (B, 4)

    # --- fc3 + relu ---
    h3 = jnp.maximum(
        jnp.dot(h2, W("w3"), preferred_element_type=jnp.float32) + W("b3"), 0.0)  # (B, 2)

    # --- exact softmax over last dim (rows sum to 1 at fp32 precision) ---
    h3 = h3 - jnp.max(h3, axis=-1, keepdims=True)
    e = jnp.exp(h3)
    probs = e / jnp.sum(e, axis=-1, keepdims=True)

    # --- output assembly: zero-init + two slice stores (no lane concatenate) ---
    out_ref[...] = jnp.zeros_like(out_ref)
    out_ref[:, 0:15] = x_rep
    out_ref[:, 15:17] = probs


# ------------------------------- wrapper ------------------------------------
def pack_params(params):
    """Pack all weights + constant mask/selection matrices into one dense
    (SLAB_ROWS, 128) f32 slab. Fuses Q/K/V, folds 1/sqrt(D) into Q, transposes
    wf2 and wp, pre-tiles fc1's weight over the batch, splits fc2's weight into
    x_rep / x_life parts. Done once, outside the jitted forward."""
    inv = 1.0 / (D ** 0.5)
    ri = jnp.arange(BL)[:, None] // L
    ci = jnp.arange(BL)[None, :] // L
    mask = jnp.where(ri == ci, 0.0, -1e30).astype(jnp.float32)              # (BL, BL)
    sel = (jnp.arange(B)[:, None] == (jnp.arange(BL)[None, :] // L)).astype(jnp.float32)

    t = {
        "we": params["we"], "be": params["be"],
        "wqkv": jnp.concatenate(
            [params["wq"] * inv, params["wk"], params["wv"]], axis=1),
        "bqkv": jnp.concatenate(
            [params["bq"] * inv, params["bk"], params["bv"]], axis=1),
        "wo": params["wo"], "bo": params["bo"],
        "g1": params["g1"], "beta1": params["beta1"],
        "wf1": params["wf1"], "bf1": params["bf1"],
        "wf2t": params["wf2"].T, "bf2": params["bf2"],
        "g2": params["g2"], "beta2": params["beta2"],
        "wpr": params["wp"].T, "bp": params["bp"],
        "w1t": jnp.tile(params["w1"], (B, 1)), "b1": params["b1"],
        "w2a": params["w2"][0:15, :], "w2b": params["w2"][15:16, :],
        "b2": params["b2"],
        "w3": params["w3"], "b3": params["b3"],
        "mask": mask, "sel": sel,
    }
    slab = jnp.zeros((SLAB_ROWS, LANES), jnp.float32)
    for name, (r0, c0, h, w) in LAYOUT.items():
        arr = jnp.asarray(t[name], jnp.float32)
        assert arr.shape == (h, w), (name, arr.shape, (h, w))
        slab = slab.at[r0:r0 + h, c0:c0 + w].set(arr)
    return slab


@jax.jit
def model_forward(x1, x2, x3, x4, x_life, slab):
    # channel-major assembly: plain concatenation of flattened inputs, no interleave
    x = jnp.concatenate(
        [x1.reshape(1, BL), x2.reshape(1, BL),
         x3.reshape(1, BL), x4.reshape(1, BL)], axis=0).astype(jnp.float32)   # (C, BL)
    xlife = x_life.astype(jnp.float32).reshape(B)

    packed = pl.pallas_call(
        model_kernel,
        out_shape=jax.ShapeDtypeStruct((B, LANES), jnp.float32),
        # no grid: single invocation, whole arrays resident (no pipeline double-buffers)
        in_specs=[
            pl.BlockSpec(memory_space=pltpu.MemorySpace.VMEM),   # x (C, BL)
            pl.BlockSpec(memory_space=pltpu.MemorySpace.SMEM),   # x_life scalars
            pl.BlockSpec(memory_space=pltpu.MemorySpace.VMEM),   # weight slab
        ],
        out_specs=pl.BlockSpec(memory_space=pltpu.MemorySpace.VMEM),
    )(x, xlife, slab)

    x_rep = packed[:, 0:15]
    out = packed[:, 15:17]
    return x_rep, out


# ------------------------- pure-JAX reference --------------------------------
def reference_forward(params, x1, x2, x3, x4, x_life):
    x = jnp.stack([x1, x2, x3, x4], axis=-1).astype(jnp.float32).reshape(BL, C)
    h = x @ params["we"] + params["be"]
    q = (h @ params["wq"] + params["bq"]) * (1.0 / (D ** 0.5))
    k = h @ params["wk"] + params["bk"]
    v = h @ params["wv"] + params["bv"]
    qb, kb, vb = (a.reshape(B, L, D) for a in (q, k, v))
    s = jnp.einsum("bld,bmd->blm", qb, kb)
    p = jax.nn.softmax(s, axis=-1)
    attn = jnp.einsum("blm,bmd->bld", p, vb).reshape(BL, D)
    ao = attn @ params["wo"] + params["bo"]
    h = _layernorm(h + ao, params["g1"], params["beta1"])
    ff = jax.nn.relu(h @ params["wf1"] + params["bf1"]) @ params["wf2"] + params["bf2"]
    h = _layernorm(h + ff, params["g2"], params["beta2"])
    x_tf = (h @ params["wp"] + params["bp"]).reshape(B, L)
    x_rep = jax.nn.relu(x_tf @ params["w1"] + params["b1"])
    xl = 5.0 * jnp.exp(x_life.astype(jnp.float32).reshape(B, 1))
    h2 = jax.nn.relu(jnp.concatenate([x_rep, xl], axis=-1) @ params["w2"] + params["b2"])
    h3 = jax.nn.relu(h2 @ params["w3"] + params["b3"])
    return x_rep, jax.nn.softmax(h3, axis=-1)


def init_params(key):
    ks = jax.random.split(key, 16)
    std = 0.1
    return {
        # attention encoder
        "we": jax.random.normal(ks[0], (C, D), jnp.float32) * std,
        "be": jnp.zeros((1, D), jnp.float32),
        "wq": jax.random.normal(ks[1], (D, D), jnp.float32) * std,
        "bq": jnp.zeros((1, D), jnp.float32),
        "wk": jax.random.normal(ks[2], (D, D), jnp.float32) * std,
        "bk": jnp.zeros((1, D), jnp.float32),
        "wv": jax.random.normal(ks[3], (D, D), jnp.float32) * std,
        "bv": jnp.zeros((1, D), jnp.float32),
        "wo": jax.random.normal(ks[4], (D, D), jnp.float32) * std,
        "bo": jnp.zeros((1, D), jnp.float32),
        "g1": jnp.ones((1, D), jnp.float32),
        "beta1": jnp.zeros((1, D), jnp.float32),
        "wf1": jax.random.normal(ks[5], (D, F), jnp.float32) * std,
        "bf1": jnp.zeros((1, F), jnp.float32),
        "wf2": jax.random.normal(ks[6], (F, D), jnp.float32) * std,
        "bf2": jnp.zeros((1, D), jnp.float32),
        "g2": jnp.ones((1, D), jnp.float32),
        "beta2": jnp.zeros((1, D), jnp.float32),
        "wp": jax.random.normal(ks[7], (D, 1), jnp.float32) * std,   # c_out = 1
        "bp": jnp.zeros((1, 1), jnp.float32),
        # head (fc1: win_size->15, fc2: 16->4, fc3: 4->2), stored (in, out)
        "w1": jax.random.normal(ks[8], (L, 15), jnp.float32) * std,
        "b1": jnp.zeros((1, 15), jnp.float32),
        "w2": jax.random.normal(ks[9], (16, 4), jnp.float32) * std,
        "b2": jnp.zeros((1, 4), jnp.float32),
        "w3": jax.random.normal(ks[10], (4, 2), jnp.float32) * std,
        "b3": jnp.zeros((1, 2), jnp.float32),
    }


if __name__ == "__main__":
    key = jax.random.PRNGKey(0)
    kp, k1, k2, k3, k4, k5 = jax.random.split(key, 6)

    params = init_params(kp)
    slab = pack_params(params)          # one-time weight packing

    x1 = jax.random.normal(k1, (B, L), jnp.float32)
    x2 = jax.random.normal(k2, (B, L), jnp.float32)
    x3 = jax.random.normal(k3, (B, L), jnp.float32)
    x4 = jax.random.normal(k4, (B, L), jnp.float32)
    x_life = jax.random.uniform(k5, (B,), jnp.float32, minval=-1.0, maxval=1.0)

    x_rep, out = model_forward(x1, x2, x3, x4, x_life, slab)
    jax.block_until_ready((x_rep, out))

    assert x_rep.shape == (B, 15) and out.shape == (B, 2)
    assert bool(jnp.all(jnp.isfinite(x_rep))) and bool(jnp.all(jnp.isfinite(out)))
    # softmax rows must sum to 1
    assert bool(jnp.allclose(jnp.sum(out, axis=-1), 1.0, atol=1e-5))

    # validate against a pure-JAX reference (loose tolerance: attention softmax
    # denominator uses the approximate EUP reciprocal inside the kernel)
    x_rep_ref, out_ref = reference_forward(params, x1, x2, x3, x4, x_life)
    assert bool(jnp.allclose(x_rep, x_rep_ref, atol=1e-2, rtol=1e-2))
    assert bool(jnp.allclose(out, out_ref, atol=1e-2, rtol=1e-2))

    print("KERNEL_OK")
</pallas_src>

<mosaic_0001>
module attributes {stable_mosaic.version = 11 : i64} {
  func.func @model_kernel(%arg0: memref<4x32xf32, #tpu.memory_space<vmem>>, %arg1: memref<2xf32, #tpu.memory_space<smem>>, %arg2: memref<104x128xf32, #tpu.memory_space<vmem>>, %arg3: memref<2x128xf32, #tpu.memory_space<vmem>>) attributes {dimension_semantics = [], scalar_prefetch = 0 : i64, scratch_operands = 0 : i64, tpu.core_type = #tpu.core_type<tc>} {
    %c0 = arith.constant 0 : index
    %c0_0 = arith.constant 0 : index
    %0 = vector.load %arg0[%c0, %c0_0] : memref<4x32xf32, #tpu.memory_space<vmem>>, vector<4x32xf32>
    %c64 = arith.constant 64 : index
    %c64_1 = arith.constant 64 : index
    %1 = vector.load %arg2[%c64, %c64_1] : memref<104x128xf32, #tpu.memory_space<vmem>>, vector<4x32xf32>
    %cst = arith.constant dense<0.000000e+00> : vector<32x32xf32>
    %2 = tpu.matmul %0, %1, %cst {dimension_numbers = #tpu.dot_dimension_numbers<[0], [0], [1], [1], [0, 1, 1, 1], [], []>} : vector<4x32xf32>, vector<4x32xf32>, vector<32x32xf32> -> vector<32x32xf32>
    %c64_2 = arith.constant 64 : index
    %c96 = arith.constant 96 : index
    %3 = vector.load %arg2[%c64_2, %c96] : memref<104x128xf32, #tpu.memory_space<vmem>>, vector<1x32xf32>
    %4 = vector.broadcast %3 : vector<1x32xf32> to vector<32x32xf32>
    %5 = arith.addf %2, %4 : vector<32x32xf32>
    %c0_3 = arith.constant 0 : index
    %c0_4 = arith.constant 0 : index
    %6 = vector.load %arg2[%c0_3, %c0_4] : memref<104x128xf32, #tpu.memory_space<vmem>>, vector<32x96xf32>
    %cst_5 = arith.constant dense<0.000000e+00> : vector<32x96xf32>
    %7 = tpu.matmul %5, %6, %cst_5 {dimension_numbers = #tpu.dot_dimension_numbers<[1], [0], [0], [1], [0, 0, 1, 1], [], []>} : vector<32x32xf32>, vector<32x96xf32>, vector<32x96xf32> -> vector<32x96xf32>
    %c96_6 = arith.constant 96 : index
    %c0_7 = arith.constant 0 : index
    %8 = vector.load %arg2[%c96_6, %c0_7] : memref<104x128xf32, #tpu.memory_space<vmem>>, vector<1x96xf32>
    %9 = vector.broadcast %8 : vector<1x96xf32> to vector<32x96xf32>
    %10 = arith.addf %7, %9 : vector<32x96xf32>
    %11 = vector.extract_strided_slice %10 {offsets = [0, 0], sizes = [32, 32], strides = [1, 1]} : vector<32x96xf32> to vector<32x32xf32>
    %12 = vector.extract_strided_slice %10 {offsets = [0, 32], sizes = [32, 32], strides = [1, 1]} : vector<32x96xf32> to vector<32x32xf32>
    %13 = vector.extract_strided_slice %10 {offsets = [0, 64], sizes = [32, 32], strides = [1, 1]} : vector<32x96xf32> to vector<32x32xf32>
    %cst_8 = arith.constant dense<0.000000e+00> : vector<32x32xf32>
    %14 = tpu.matmul %11, %12, %cst_8 {dimension_numbers = #tpu.dot_dimension_numbers<[1], [1], [0], [0], [0, 0, 1, 0], [], []>} : vector<32x32xf32>, vector<32x32xf32>, vector<32x32xf32> -> vector<32x32xf32>
    %c64_9 = arith.constant 64 : index
    %c0_10 = arith.constant 0 : index
    %15 = vector.load %arg2[%c64_9, %c0_10] : memref<104x128xf32, #tpu.memory_space<vmem>>, vector<32x32xf32>
    %16 = arith.addf %14, %15 : vector<32x32xf32>
    %cst_11 = arith.constant dense<0xFF800000> : vector<32xf32>
    %17 = vector.multi_reduction <maximumf>, %16, %cst_11 [1] : vector<32x32xf32> to vector<32xf32>
    %18 = vector.shape_cast %17 : vector<32xf32> to vector<32x1xf32>
    %19 = vector.broadcast %18 : vector<32x1xf32> to vector<32x32xf32>
    %20 = arith.subf %16, %19 : vector<32x32xf32>
    %21 = math.exp %20 : vector<32x32xf32>
    %cst_12 = arith.constant dense<0.000000e+00> : vector<32xf32>
    %22 = vector.multi_reduction <add>, %21, %cst_12 [1] : vector<32x32xf32> to vector<32xf32>
    %23 = vector.shape_cast %22 : vector<32xf32> to vector<32x1xf32>
    %24 = tpu.reciprocal %23 {approx = true} : vector<32x1xf32> -> vector<32x1xf32>
    %25 = vector.broadcast %24 : vector<32x1xf32> to vector<32x32xf32>
    %26 = arith.mulf %21, %25 : vector<32x32xf32>
    %cst_13 = arith.constant dense<0.000000e+00> : vector<32x32xf32>
    %27 = tpu.matmul %26, %13, %cst_13 {dimension_numbers = #tpu.dot_dimension_numbers<[1], [0], [0], [1], [0, 0, 1, 1], [], []>} : vector<32x32xf32>, vector<32x32xf32>, vector<32x32xf32> -> vector<32x32xf32>
    %c0_14 = arith.constant 0 : index
    %c96_15 = arith.constant 96 : index
    %28 = vector.load %arg2[%c0_14, %c96_15] : memref<104x128xf32, #tpu.memory_space<vmem>>, vector<32x32xf32>
    %cst_16 = arith.constant dense<0.000000e+00> : vector<32x32xf32>
    %29 = tpu.matmul %27, %28, %cst_16 {dimension_numbers = #tpu.dot_dimension_numbers<[1], [0], [0], [1], [0, 0, 1, 1], [], []>} : vector<32x32xf32>, vector<32x32xf32>, vector<32x32xf32> -> vector<32x32xf32>
    %c65 = arith.constant 65 : index
    %c96_17 = arith.constant 96 : index
    %30 = vector.load %arg2[%c65, %c96_17] : memref<104x128xf32, #tpu.memory_space<vmem>>, vector<1x32xf32>
    %31 = vector.broadcast %30 : vector<1x32xf32> to vector<32x32xf32>
    %32 = arith.addf %29, %31 : vector<32x32xf32>
    %33 = arith.addf %5, %32 : vector<32x32xf32>
    %c66 = arith.constant 66 : index
    %c96_18 = arith.constant 96 : index
    %34 = vector.load %arg2[%c66, %c96_18] : memref<104x128xf32, #tpu.memory_space<vmem>>, vector<1x32xf32>
    %c67 = arith.constant 67 : index
    %c96_19 = arith.constant 96 : index
    %35 = vector.load %arg2[%c67, %c96_19] : memref<104x128xf32, #tpu.memory_space<vmem>>, vector<1x32xf32>
    %cst_20 = arith.constant dense<0.000000e+00> : vector<32xf32>
    %36 = vector.multi_reduction <add>, %33, %cst_20 [1] : vector<32x32xf32> to vector<32xf32>
    %37 = vector.shape_cast %36 : vector<32xf32> to vector<32x1xf32>
    %cst_21 = arith.constant 3.200000e+01 : f32
    %38 = vector.broadcast %cst_21 : f32 to vector<32x1xf32>
    %39 = arith.divf %37, %38 : vector<32x1xf32>
    %40 = vector.broadcast %39 : vector<32x1xf32> to vector<32x32xf32>
    %41 = arith.subf %33, %40 : vector<32x32xf32>
    %42 = vector.broadcast %39 : vector<32x1xf32> to vector<32x32xf32>
    %43 = arith.subf %33, %42 : vector<32x32xf32>
    %44 = arith.mulf %41, %43 : vector<32x32xf32>
    %cst_22 = arith.constant dense<0.000000e+00> : vector<32xf32>
    %45 = vector.multi_reduction <add>, %44, %cst_22 [1] : vector<32x32xf32> to vector<32xf32>
    %46 = vector.shape_cast %45 : vector<32xf32> to vector<32x1xf32>
    %cst_23 = arith.constant 3.200000e+01 : f32
    %47 = vector.broadcast %cst_23 : f32 to vector<32x1xf32>
    %48 = arith.divf %46, %47 : vector<32x1xf32>
    %49 = vector.broadcast %39 : vector<32x1xf32> to vector<32x32xf32>
    %50 = arith.subf %33, %49 : vector<32x32xf32>
    %cst_24 = arith.constant 9.99999974E-6 : f32
    %51 = vector.broadcast %cst_24 : f32 to vector<32x1xf32>
    %52 = arith.addf %48, %51 : vector<32x1xf32>
    %53 = math.rsqrt %52 : vector<32x1xf32>
    %54 = vector.broadcast %53 : vector<32x1xf32> to vector<32x32xf32>
    %55 = arith.mulf %50, %54 : vector<32x32xf32>
    %56 = vector.broadcast %34 : vector<1x32xf32> to vector<32x32xf32>
    %57 = arith.mulf %55, %56 : vector<32x32xf32>
    %58 = vector.broadcast %35 : vector<1x32xf32> to vector<32x32xf32>
    %59 = arith.addf %57, %58 : vector<32x32xf32>
    %c32 = arith.constant 32 : index
    %c0_25 = arith.constant 0 : index
    %60 = vector.load %arg2[%c32, %c0_25] : memref<104x128xf32, #tpu.memory_space<vmem>>, vector<32x64xf32>
    %cst_26 = arith.constant dense<0.000000e+00> : vector<32x64xf32>
    %61 = tpu.matmul %59, %60, %cst_26 {dimension_numbers = #tpu.dot_dimension_numbers<[1], [0], [0], [1], [0, 0, 1, 1], [], []>} : vector<32x32xf32>, vector<32x64xf32>, vector<32x64xf32> -> vector<32x64xf32>
    %c97 = arith.constant 97 : index
    %c0_27 = arith.constant 0 : index
    %62 = vector.load %arg2[%c97, %c0_27] : memref<104x128xf32, #tpu.memory_space<vmem>>, vector<1x64xf32>
    %63 = vector.broadcast %62 : vector<1x64xf32> to vector<32x64xf32>
    %64 = arith.addf %61, %63 : vector<32x64xf32>
    %cst_28 = arith.constant 0.000000e+00 : f32
    %65 = vector.broadcast %cst_28 : f32 to vector<32x64xf32>
    %66 = arith.maximumf %64, %65 : vector<32x64xf32>
    %c32_29 = arith.constant 32 : index
    %c64_30 = arith.constant 64 : index
    %67 = vector.load %arg2[%c32_29, %c64_30] : memref<104x128xf32, #tpu.memory_space<vmem>>, vector<32x64xf32>
    %cst_31 = arith.constant dense<0.000000e+00> : vector<32x32xf32>
    %68 = tpu.matmul %66, %67, %cst_31 {dimension_numbers = #tpu.dot_dimension_numbers<[1], [1], [0], [0], [0, 0, 1, 0], [], []>} : vector<32x64xf32>, vector<32x64xf32>, vector<32x32xf32> -> vector<32x32xf32>
    %c68 = arith.constant 68 : index
    %c96_32 = arith.constant 96 : index
    %69 = vector.load %arg2[%c68, %c96_32] : memref<104x128xf32, #tpu.memory_space<vmem>>, vector<1x32xf32>
    %70 = vector.broadcast %69 : vector<1x32xf32> to vector<32x32xf32>
    %71 = arith.addf %68, %70 : vector<32x32xf32>
    %72 = arith.addf %59, %71 : vector<32x32xf32>
    %c69 = arith.constant 69 : index
    %c96_33 = arith.constant 96 : index
    %73 = vector.load %arg2[%c69, %c96_33] : memref<104x128xf32, #tpu.memory_space<vmem>>, vector<1x32xf32>
    %c70 = arith.constant 70 : index
    %c96_34 = arith.constant 96 : index
    %74 = vector.load %arg2[%c70, %c96_34] : memref<104x128xf32, #tpu.memory_space<vmem>>, vector<1x32xf32>
    %cst_35 = arith.constant dense<0.000000e+00> : vector<32xf32>
    %75 = vector.multi_reduction <add>, %72, %cst_35 [1] : vector<32x32xf32> to vector<32xf32>
    %76 = vector.shape_cast %75 : vector<32xf32> to vector<32x1xf32>
    %cst_36 = arith.constant 3.200000e+01 : f32
    %77 = vector.broadcast %cst_36 : f32 to vector<32x1xf32>
    %78 = arith.divf %76, %77 : vector<32x1xf32>
    %79 = vector.broadcast %78 : vector<32x1xf32> to vector<32x32xf32>
    %80 = arith.subf %72, %79 : vector<32x32xf32>
    %81 = vector.broadcast %78 : vector<32x1xf32> to vector<32x32xf32>
    %82 = arith.subf %72, %81 : vector<32x32xf32>
    %83 = arith.mulf %80, %82 : vector<32x32xf32>
    %cst_37 = arith.constant dense<0.000000e+00> : vector<32xf32>
    %84 = vector.multi_reduction <add>, %83, %cst_37 [1] : vector<32x32xf32> to vector<32xf32>
    %85 = vector.shape_cast %84 : vector<32xf32> to vector<32x1xf32>
    %cst_38 = arith.constant 3.200000e+01 : f32
    %86 = vector.broadcast %cst_38 : f32 to vector<32x1xf32>
    %87 = arith.divf %85, %86 : vector<32x1xf32>
    %88 = vector.broadcast %78 : vector<32x1xf32> to vector<32x32xf32>
    %89 = arith.subf %72, %88 : vector<32x32xf32>
    %cst_39 = arith.constant 9.99999974E-6 : f32
    %90 = vector.broadcast %cst_39 : f32 to vector<32x1xf32>
    %91 = arith.addf %87, %90 : vector<32x1xf32>
    %92 = math.rsqrt %91 : vector<32x1xf32>
    %93 = vector.broadcast %92 : vector<32x1xf32> to vector<32x32xf32>
    %94 = arith.mulf %89, %93 : vector<32x32xf32>
    %95 = vector.broadcast %73 : vector<1x32xf32> to vector<32x32xf32>
    %96 = arith.mulf %94, %95 : vector<32x32xf32>
    %97 = vector.broadcast %74 : vector<1x32xf32> to vector<32x32xf32>
    %98 = arith.addf %96, %97 : vector<32x32xf32>
    %c71 = arith.constant 71 : index
    %c96_40 = arith.constant 96 : index
    %99 = vector.load %arg2[%c71, %c96_40] : memref<104x128xf32, #tpu.memory_space<vmem>>, vector<1x32xf32>
    %100 = vector.broadcast %99 : vector<1x32xf32> to vector<32x32xf32>
    %101 = arith.mulf %98, %100 : vector<32x32xf32>
    %cst_41 = arith.constant dense<0.000000e+00> : vector<32xf32>
    %102 = vector.multi_reduction <add>, %101, %cst_41 [1] : vector<32x32xf32> to vector<32xf32>
    %103 = vector.shape_cast %102 : vector<32xf32> to vector<32x1xf32>
    %c90 = arith.constant 90 : index
    %c64_42 = arith.constant 64 : index
    %104 = vector.load %arg2[%c90, %c64_42] : memref<104x128xf32, #tpu.memory_space<vmem>>, vector<1x1xf32>
    %105 = vector.broadcast %104 : vector<1x1xf32> to vector<32x1xf32>
    %106 = arith.addf %103, %105 : vector<32x1xf32>
    %c68_43 = arith.constant 68 : index
    %c64_44 = arith.constant 64 : index
    %107 = vector.load %arg2[%c68_43, %c64_44] : memref<104x128xf32, #tpu.memory_space<vmem>>, vector<2x32xf32>
    %c64_45 = arith.constant 64 : index
    %c32_46 = arith.constant 32 : index
    %108 = vector.load %arg2[%c64_45, %c32_46] : memref<104x128xf32, #tpu.memory_space<vmem>>, vector<32x15xf32>
    %109 = vector.broadcast %106 : vector<32x1xf32> to vector<32x15xf32>
    %110 = arith.mulf %109, %108 : vector<32x15xf32>
    %cst_47 = arith.constant dense<0.000000e+00> : vector<2x15xf32>
    %111 = tpu.matmul %107, %110, %cst_47 {dimension_numbers = #tpu.dot_dimension_numbers<[1], [0], [0], [1], [0, 0, 1, 1], [], []>} : vector<2x32xf32>, vector<32x15xf32>, vector<2x15xf32> -> vector<2x15xf32>
    %c72 = arith.constant 72 : index
    %c96_48 = arith.constant 96 : index
    %112 = vector.load %arg2[%c72, %c96_48] : memref<104x128xf32, #tpu.memory_space<vmem>>, vector<1x15xf32>
    %113 = vector.broadcast %112 : vector<1x15xf32> to vector<2x15xf32>
    %114 = arith.addf %111, %113 : vector<2x15xf32>
    %cst_49 = arith.constant 0.000000e+00 : f32
    %115 = vector.broadcast %cst_49 : f32 to vector<2x15xf32>
    %116 = arith.maximumf %114, %115 : vector<2x15xf32>
    %117 = tpu.iota {dimensions = array<i32: 0>} : vector<2x1xi32>
    %cst_50 = arith.constant 0.000000e+00 : f32
    %118 = vector.broadcast %cst_50 : f32 to vector<2x1xf32>
    %c0_i32 = arith.constant 0 : i32
    %119 = vector.broadcast %c0_i32 : i32 to vector<2x1xi32>
    %120 = arith.cmpi eq, %117, %119 : vector<2x1xi32>
    %c0_51 = arith.constant 0 : index
    %121 = memref.load %arg1[%c0_51] : memref<2xf32, #tpu.memory_space<smem>>
    %122 = vector.broadcast %121 : f32 to vector<2x1xf32>
    %123 = arith.select %120, %122, %118 : vector<2x1xi1>, vector<2x1xf32>
    %c1_i32 = arith.constant 1 : i32
    %124 = vector.broadcast %c1_i32 : i32 to vector<2x1xi32>
    %125 = arith.cmpi eq, %117, %124 : vector<2x1xi32>
    %c1 = arith.constant 1 : index
    %126 = memref.load %arg1[%c1] : memref<2xf32, #tpu.memory_space<smem>>
    %127 = vector.broadcast %126 : f32 to vector<2x1xf32>
    %128 = arith.select %125, %127, %123 : vector<2x1xi1>, vector<2x1xf32>
    %129 = math.exp %128 : vector<2x1xf32>
    %cst_52 = arith.constant 5.000000e+00 : f32
    %130 = vector.broadcast %cst_52 : f32 to vector<2x1xf32>
    %131 = arith.mulf %130, %129 : vector<2x1xf32>
    %c70_53 = arith.constant 70 : index
    %c64_54 = arith.constant 64 : index
    %132 = vector.load %arg2[%c70_53, %c64_54] : memref<104x128xf32, #tpu.memory_space<vmem>>, vector<15x4xf32>
    %cst_55 = arith.constant dense<0.000000e+00> : vector<2x4xf32>
    %133 = tpu.matmul %116, %132, %cst_55 {dimension_numbers = #tpu.dot_dimension_numbers<[1], [0], [0], [1], [0, 0, 1, 1], [], []>} : vector<2x15xf32>, vector<15x4xf32>, vector<2x4xf32> -> vector<2x4xf32>
    %c89 = arith.constant 89 : index
    %c64_56 = arith.constant 64 : index
    %134 = vector.load %arg2[%c89, %c64_56] : memref<104x128xf32, #tpu.memory_space<vmem>>, vector<1x4xf32>
    %135 = vector.broadcast %131 : vector<2x1xf32> to vector<2x4xf32>
    %136 = vector.broadcast %134 : vector<1x4xf32> to vector<2x4xf32>
    %137 = arith.mulf %135, %136 : vector<2x4xf32>
    %138 = arith.addf %133, %137 : vector<2x4xf32>
    %c73 = arith.constant 73 : index
    %c96_57 = arith.constant 96 : index
    %139 = vector.load %arg2[%c73, %c96_57] : memref<104x128xf32, #tpu.memory_space<vmem>>, vector<1x4xf32>
    %140 = vector.broadcast %139 : vector<1x4xf32> to vector<2x4xf32>
    %141 = arith.addf %138, %140 : vector<2x4xf32>
    %cst_58 = arith.constant 0.000000e+00 : f32
    %142 = vector.broadcast %cst_58 : f32 to vector<2x4xf32>
    %143 = arith.maximumf %141, %142 : vector<2x4xf32>
    %c85 = arith.constant 85 : index
    %c64_59 = arith.constant 64 : index
    %144 = vector.load %arg2[%c85, %c64_59] : memref<104x128xf32, #tpu.memory_space<vmem>>, vector<4x2xf32>
    %cst_60 = arith.constant dense<0.000000e+00> : vector<2x2xf32>
    %145 = tpu.matmul %143, %144, %cst_60 {dimension_numbers = #tpu.dot_dimension_numbers<[1], [0], [0], [1], [0, 0, 1, 1], [], []>} : vector<2x4xf32>, vector<4x2xf32>, vector<2x2xf32> -> vector<2x2xf32>
    %c74 = arith.constant 74 : index
    %c96_61 = arith.constant 96 : index
    %146 = vector.load %arg2[%c74, %c96_61] : memref<104x128xf32, #tpu.memory_space<vmem>>, vector<1x2xf32>
    %147 = vector.broadcast %146 : vector<1x2xf32> to vector<2x2xf32>
    %148 = arith.addf %145, %147 : vector<2x2xf32>
    %cst_62 = arith.constant 0.000000e+00 : f32
    %149 = vector.broadcast %cst_62 : f32 to vector<2x2xf32>
    %150 = arith.maximumf %148, %149 : vector<2x2xf32>
    %cst_63 = arith.constant dense<0xFF800000> : vector<2xf32>
    %151 = vector.multi_reduction <maximumf>, %150, %cst_63 [1] : vector<2x2xf32> to vector<2xf32>
    %152 = vector.shape_cast %151 : vector<2xf32> to vector<2x1xf32>
    %153 = vector.broadcast %152 : vector<2x1xf32> to vector<2x2xf32>
    %154 = arith.subf %150, %153 : vector<2x2xf32>
    %155 = math.exp %154 : vector<2x2xf32>
    %cst_64 = arith.constant dense<0.000000e+00> : vector<2xf32>
    %156 = vector.multi_reduction <add>, %155, %cst_64 [1] : vector<2x2xf32> to vector<2xf32>
    %157 = vector.shape_cast %156 : vector<2xf32> to vector<2x1xf32>
    %158 = vector.broadcast %157 : vector<2x1xf32> to vector<2x2xf32>
    %159 = arith.divf %155, %158 : vector<2x2xf32>
    %cst_65 = arith.constant 0.000000e+00 : f32
    %160 = vector.broadcast %cst_65 : f32 to vector<2x128xf32>
    %c0_66 = arith.constant 0 : index
    %c0_67 = arith.constant 0 : index
    %161 = vector.load %arg3[%c0_66, %c0_67] : memref<2x128xf32, #tpu.memory_space<vmem>>, vector<2x128xf32>
    tpu.vector_store %arg3[%c0_66, %c0_67], %160 {strides = array<i32>} : memref<2x128xf32, #tpu.memory_space<vmem>>, vector<2x128xf32>,
    %c0_68 = arith.constant 0 : index
    %c0_69 = arith.constant 0 : index
    %162 = vector.load %arg3[%c0_68, %c0_69] : memref<2x128xf32, #tpu.memory_space<vmem>>, vector<2x15xf32>
    tpu.vector_store %arg3[%c0_68, %c0_69], %116 {strides = array<i32>} : memref<2x128xf32, #tpu.memory_space<vmem>>, vector<2x15xf32>,
    %c0_70 = arith.constant 0 : index
    %c15 = arith.constant 15 : index
    %163 = vector.load %arg3[%c0_70, %c15] : memref<2x128xf32, #tpu.memory_space<vmem>>, vector<2x2xf32>
    tpu.vector_store %arg3[%c0_70, %c15], %159 {strides = array<i32>} : memref<2x128xf32, #tpu.memory_space<vmem>>, vector<2x2xf32>,
    return
  }
}

</mosaic_0001>

<llo_original>
// kernel: model_forward.1
$region0: #{model_forward.1}
  #allocation0 [shape = 'u32[]', space=smem, size = 0x4, offset = 0x4, fixed_abs, tag = 'smem constant byte address 0x4 - core index']
  #allocation1 [shape = 'u32[144,128]{1,0:T(1,128)}', space=vmem, size = 0x12000, scoped, tag = 'internal scratch']
  %s0 = inlined_call_operand.vmem [shape: f32[4,32], index: 0, kind: input, shape index: {}]
  %s1 = inlined_call_operand.vmem [shape: f32[2], index: 1, kind: input, shape index: {}]
  %s2 = inlined_call_operand.hbm [shape: f32[104,128], index: 2, kind: input, shape index: {}]
  %s3 = inlined_call_operand.vmem [shape: f32[2,128], index: 3, kind: output, shape index: {}]
  %s4 = sld [smem:[#allocation0]]
  $region30: #{model_forward.1} parent=0
    _
  %s6 = ssub.s32 1, %s4
  %s7 = scalar_select 0, %s6, %s4
  $region1: #{model_forward.1} parent=0
    #allocation2 [shape = 'u8[512]{0}', space=smem, size = 0x200, scoped, tag = 'input window, operand 1, single buffered']
    #allocation3 [shape = 's32[1]{0}', space=sflag, size = 0x4, scoped, tag = 'scoped memory for model_forward.1']
    #allocation4 [shape = 's32[1]{0}', space=sflag, size = 0x4, scoped, tag = 'scoped memory for model_forward.1']
    #allocation5 [shape = 'u8[53248]{0}', space=vmem, size = 0xd000, scoped, tag = 'input window, operand 2, single buffered']
    %8 = vsyncpa [#allocation4], 0
    %9 = vsyncpa [#allocation3], 0
    // Predicated region
    $region2: #{model_forward.1} parent=1 // pred_check
      _
    $region3: #{model_forward.1} parent=1 // pred_check_branch
      %11 = sbr.rel (0) target = $region5
    $region4: #{model_forward.1} parent=1 // pred_region
      _
    $region5: #{model_forward.1} parent=1 // pred_fallthru
      _
    // Predicated region
    $region6: #{model_forward.1} parent=1 // pred_check
      _
    $region7: #{model_forward.1} parent=1 // pred_check_branch
      %13 = sbr.rel (0) target = $region9
    $region8: #{model_forward.1} parent=1 // pred_region
      %s15 = ssub.s32 16, 16
      %16 = vsyncadd [#allocation4], %s15
      %s18 = sshll.u32 %s1, 4
      %s19 = int_to_ptr.vmem [resolvable:$true] %s18
      %21 = dma.vmem_to_smem %s19, 16, [#allocation2], [#allocation4]
    $region9: #{model_forward.1} parent=1 // pred_fallthru
      _
    // Predicated region
    $region10: #{model_forward.1} parent=1 // pred_check
      _
    $region11: #{model_forward.1} parent=1 // pred_check_branch
      %23 = sbr.rel (0) target = $region13
    $region12: #{model_forward.1} parent=1 // pred_region
      %s25 = ssub.s32 1664, 1664
      %26 = vsyncadd [#allocation3], %s25
      %s27 = sshll.u32 [#allocation5], 4
      %s28 = int_to_ptr.vmem [resolvable:$true] %s27
      %33 = dma.hbm_to_vmem [thread:$0]  %s2, 1664, %s28, [#allocation3], 128, 128, 8
    $region13: #{model_forward.1} parent=1 // pred_fallthru
      _
    // Predicated region
    $region14: #{model_forward.1} parent=1 // pred_check
      _
    $region15: #{model_forward.1} parent=1 // pred_check_branch
      %35 = sbr.rel (0) target = $region17
    $region16: #{model_forward.1} parent=1 // pred_region
      %36 = dma.done [#allocation4], 16
    $region17: #{model_forward.1} parent=1 // pred_fallthru
      _
    // Predicated region
    $region18: #{model_forward.1} parent=1 // pred_check
      _
    $region19: #{model_forward.1} parent=1 // pred_check_branch
      %38 = sbr.rel (0) target = $region21
    $region20: #{model_forward.1} parent=1 // pred_region
      %39 = dma.done [#allocation3], 1664
    $region21: #{model_forward.1} parent=1 // pred_fallthru
      _
    %40 = sfence
    %v41 = vld [vmem:[%s0] sm:$0xf]
    %v42 = vld [vmem:[#allocation5 + $0x40] sm:$0xf]
    %v43 = vld [vmem:[#allocation5 + $0x40] sm:$0x1]
    %v44 = vlaneseq
    %v45 = vshrl.u32 %v44, 7
    %v46 = vsub.s32 0, %v45
    %v47 = vrot.slane %v43, %v46
    %48 = vxpose.xlu0.b32.start [1/16] %v41, 128
    %49 = vxpose.xlu0.b32.cont [2/16] 0.0, 128
    %50 = vxpose.xlu0.b32.cont [3/16] 0.0, 128
    %51 = vxpose.xlu0.b32.cont [4/16] 0.0, 128
    %52 = vxpose.xlu0.b32.cont [5/16] 0.0, 128
    %53 = vxpose.xlu0.b32.cont [6/16] 0.0, 128
    %54 = vxpose.xlu0.b32.cont [7/16] 0.0, 128
    %55 = vxpose.xlu0.b32.cont [8/16] 0.0, 128
    %56 = vxpose.xlu0.b32.cont [9/16] 0.0, 128
    %57 = vxpose.xlu0.b32.cont [10/16] 0.0, 128
    %58 = vxpose.xlu0.b32.cont [11/16] 0.0, 128
    %59 = vxpose.xlu0.b32.cont [12/16] 0.0, 128
    %60 = vxpose.xlu0.b32.cont [13/16] 0.0, 128
    %61 = vxpose.xlu0.b32.cont [14/16] 0.0, 128
    %62 = vxpose.xlu0.b32.cont [15/16] 0.0, 128
    %63 = vxpose.xlu0.b32.end [16/16] 0.0, 128
    %v64 = vpop.trf.xlu0
    %v65 = vpop.trf.xlu0
    %v66 = vpop.trf.xlu0
    %v67 = vpop.trf.xlu0
    %v68 = vpop.trf.xlu0
    %v69 = vpop.trf.xlu0
    %v70 = vpop.trf.xlu0
    %v71 = vpop.trf.xlu0
    %v72 = vpop.trf.xlu0
    %v73 = vpop.trf.xlu0
    %v74 = vpop.trf.xlu0
    %v75 = vpop.trf.xlu0
    %v76 = vpop.trf.xlu0
    %v77 = vpop.trf.xlu0
    %v78 = vpop.trf.xlu0
    %v79 = vpop.trf.xlu0
    %81 = vrot.lane.b32.xlu0 %v42, 64
    %v82 = vpop.permute.xlu0 %81
    %84 = vrot.lane.b32.xlu0 %v47, 32
    %v85 = vpop.permute.xlu0 %84
    %vm87 = vcmask 31744
    %v89 = vsel %vm87, %v64, 0
    %v92 = vsel %vm87, %v65, 0
    %v95 = vsel %vm87, %v66, 0
    %v98 = vsel %vm87, %v67, 0
    %vm100 = vcmask 1043456
    %v101 = vsel %vm100, %v82, 0
    %103 = vmatprep.subr.mxu0 0.0
    %104 = vmatpush1.msra.mxu0 %v101
    %105 = vmatprep.subr.mxu0 0.0
    %106 = vmatpush1.msra.mxu0 0.0
    %107 = vmatprep.subr.mxu0 0.0
    %108 = vmatpush1.msra.mxu0 0.0
    %109 = vmatprep.subr.mxu0 0.0
    %110 = vmatpush1.msra.mxu0 0.0
    %111 = vmatprep.subr.mxu0 0.0
    %112 = vmatpush1.msra.mxu0 0.0
    %113 = vmatprep.subr.mxu0 0.0
    %114 = vmatpush1.msra.mxu0 0.0
    %115 = vmatprep.subr.mxu0 0.0
    %116 = vmatpush1.msra.mxu0 0.0
    %117 = vmatprep.subr.mxu0 0.0
    %118 = vmatpush1.msra.mxu0 0.0
    %119 = vmatprep.subr.mxu0 0.0
    %120 = vmatpush1.msra.mxu0 0.0
    %121 = vmatprep.subr.mxu0 0.0
    %122 = vmatpush1.msra.mxu0 0.0
    %123 = vmatprep.subr.mxu0 0.0
    %124 = vmatpush1.msra.mxu0 0.0
    %125 = vmatprep.subr.mxu0 0.0
    %126 = vmatpush1.msra.mxu0 0.0
    %127 = vmatprep.subr.mxu0 0.0
    %128 = vmatpush1.msra.mxu0 0.0
    %129 = vmatprep.subr.mxu0 0.0
    %130 = vmatpush1.msra.mxu0 0.0
    %131 = vmatprep.subr.mxu0 0.0
    %132 = vmatpush1.msra.mxu0 0.0
    %133 = vmatprep.subr.mxu0 0.0
    %134 = vmatpush1.msra.mxu0 0.0
    %135 = vmatprep.subr.mxu0 0.0
    %136 = vmatpush1.msra.mxu0 0.0
    %137 = vmatprep.subr.mxu0 0.0
    %138 = vmatpush1.msra.mxu0 0.0
    %139 = vmatprep.subr.mxu0 0.0
    %140 = vmatpush1.msra.mxu0 0.0
    %141 = vmatprep.subr.mxu0 0.0
    %142 = vmatpush1.msra.mxu0 0.0
    %143 = vmatprep.subr.mxu0 0.0
    %144 = vmatpush1.msra.mxu0 0.0
    %145 = vmatprep.subr.mxu0 0.0
    %146 = vmatpush1.msra.mxu0 0.0
    %147 = vmatprep.subr.mxu0 0.0
    %148 = vmatpush1.msra.mxu0 0.0
    %149 = vmatprep.subr.mxu0 0.0
    %150 = vmatpush1.msra.mxu0 0.0
    %151 = vmatprep.subr.mxu0 0.0
    %152 = vmatpush1.msra.mxu0 0.0
    %153 = vmatprep.subr.mxu0 0.0
    %154 = vmatpush1.msra.mxu0 0.0
    %155 = vmatprep.subr.mxu0 0.0
    %156 = vmatpush1.msra.mxu0 0.0
    %157 = vmatprep.subr.mxu0 0.0
    %158 = vmatpush1.msra.mxu0 0.0
    %159 = vmatprep.subr.mxu0 0.0
    %160 = vmatpush1.msra.mxu0 0.0
    %161 = vmatprep.subr.mxu0 0.0
    %162 = vmatpush1.msra.mxu0 0.0
    %163 = vmatprep.subr.mxu0 0.0
    %164 = vmatpush1.msra.mxu0 0.0
    %165 = vmatprep.subr.mxu0 0.0
    %166 = vmatpush1.msra.mxu0 0.0
    %167 = vmatprep.mubr.f32.mxu0 0.0
    %168 = vmatmul.mubr.f32.gmra.mrb[0].mxu0 %v89
    %v169 = vpop.f32.mrb[0].mxu0
    %v170 = vadd.f32 %v85, %v169
    %v171 = vpop.f32.mrb[0].mxu0
    %172 = vmatprep.mubr.f32.mxu0 0.0
    %173 = vmatmul.mubr.f32.gmra.mrb[0].mxu0 %v92
    %v174 = vpop.f32.mrb[0].mxu0
    %v175 = vadd.f32 %v85, %v174
    %v176 = vpop.f32.mrb[0].mxu0
    %177 = vmatprep.mubr.f32.mxu0 0.0
    %178 = vmatmul.mubr.f32.gmra.mrb[0].mxu0 %v95
    %v179 = vpop.f32.mrb[0].mxu0
    %v180 = vadd.f32 %v85, %v179
    %v181 = vpop.f32.mrb[0].mxu0
    %182 = vmatprep.mubr.f32.mxu0 0.0
    %183 = vmatmul.mubr.f32.gmra.mrb[0].mxu0 %v98
    %v184 = vpop.f32.mrb[0].mxu0
    %v185 = vadd.f32 %v85, %v184
    %v186 = vpop.f32.mrb[0].mxu0
    %187 = vdwg.mxu0
    %v188 = vld [vmem:[#allocation5] sm:$0xff]
    %v189 = vld [vmem:[#allocation5 + $0x8] sm:$0xff]
    %v190 = vld [vmem:[#allocation5 + $0x10] sm:$0xff]
    %v191 = vld [vmem:[#allocation5 + $0x18] sm:$0xff]
    %v192 = vld [vmem:[#allocation5 + $0x60] sm:$0x1]
    %v193 = vlaneseq
    %v194 = vshrl.u32 %v193, 7
    %v195 = vsub.s32 0, %v194
    %v196 = vrot.slane %v192, %v195
    %vm197 = vcmask 261120
    %v199 = vsel %vm197, %v170, 0
    %v202 = vsel %vm197, %v175, 0
    %v205 = vsel %vm197, %v180, 0
    %v208 = vsel %vm197, %v185, 0
    %210 = vmatprep.subr.mxu0 0.0
    %211 = vmatpush1.msra.mxu0 %v188
    %212 = vmatprep.subr.mxu0 0.0
    %213 = vmatpush1.msra.mxu0 %v189
    %214 = vmatprep.subr.mxu0 0.0
    %215 = vmatpush1.msra.mxu0 %v190
    %216 = vmatprep.subr.mxu0 0.0
    %217 = vmatpush1.msra.mxu0 %v191
    %218 = vmatprep.subr.mxu0 0.0
    %219 = vmatpush1.msra.mxu0 0.0
    %220 = vmatprep.subr.mxu0 0.0
    %221 = vmatpush1.msra.mxu0 0.0
    %222 = vmatprep.subr.mxu0 0.0
    %223 = vmatpush1.msra.mxu0 0.0
    %224 = vmatprep.subr.mxu0 0.0
    %225 = vmatpush1.msra.mxu0 0.0
    %226 = vmatprep.subr.mxu0 0.0
    %227 = vmatpush1.msra.mxu0 0.0
    %228 = vmatprep.subr.mxu0 0.0
    %229 = vmatpush1.msra.mxu0 0.0
    %230 = vmatprep.subr.mxu0 0.0
    %231 = vmatpush1.msra.mxu0 0.0
    %232 = vmatprep.subr.mxu0 0.0
    %233 = vmatpush1.msra.mxu0 0.0
    %234 = vmatprep.subr.mxu0 0.0
    %235 = vmatpush1.msra.mxu0 0.0
    %236 = vmatprep.subr.mxu0 0.0
    %237 = vmatpush1.msra.mxu0 0.0
    %238 = vmatprep.subr.mxu0 0.0
    %239 = vmatpush1.msra.mxu0 0.0
    %240 = vmatprep.subr.mxu0 0.0
    %241 = vmatpush1.msra.mxu0 0.0
    %242 = vmatprep.subr.mxu0 0.0
    %243 = vmatpush1.msra.mxu0 0.0
    %244 = vmatprep.subr.mxu0 0.0
    %245 = vmatpush1.msra.mxu0 0.0
    %246 = vmatprep.subr.mxu0 0.0
    %247 = vmatpush1.msra.mxu0 0.0
    %248 = vmatprep.subr.mxu0 0.0
    %249 = vmatpush1.msra.mxu0 0.0
    %250 = vmatprep.subr.mxu0 0.0
    %251 = vmatpush1.msra.mxu0 0.0
    %252 = vmatprep.subr.mxu0 0.0
    %253 = vmatpush1.msra.mxu0 0.0
    %254 = vmatprep.subr.mxu0 0.0
    %255 = vmatpush1.msra.mxu0 0.0
    %256 = vmatprep.subr.mxu0 0.0
    %257 = vmatpush1.msra.mxu0 0.0
    %258 = vmatprep.subr.mxu0 0.0
    %259 = vmatpush1.msra.mxu0 0.0
    %260 = vmatprep.subr.mxu0 0.0
    %261 = vmatpush1.msra.mxu0 0.0
    %262 = vmatprep.subr.mxu0 0.0
    %263 = vmatpush1.msra.mxu0 0.0
    %264 = vmatprep.subr.mxu0 0.0
    %265 = vmatpush1.msra.mxu0 0.0
    %266 = vmatprep.subr.mxu0 0.0
    %267 = vmatpush1.msra.mxu0 0.0
    %268 = vmatprep.subr.mxu0 0.0
    %269 = vmatpush1.msra.mxu0 0.0
    %270 = vmatprep.subr.mxu0 0.0
    %271 = vmatpush1.msra.mxu0 0.0
    %272 = vmatprep.subr.mxu0 0.0
    %273 = vmatpush1.msra.mxu0 0.0
    %274 = vmatprep.mubr.f32.mxu0 0.0
    %275 = vmatmul.mubr.f32.gmra.mrb[0].mxu0 %v199
    %v276 = vpop.f32.mrb[0].mxu0
    %v277 = vadd.f32 %v196, %v276
    %v278 = vpop.f32.mrb[0].mxu0
    %279 = vmatprep.mubr.f32.mxu0 0.0
    %280 = vmatmul.mubr.f32.gmra.mrb[0].mxu0 %v202
    %v281 = vpop.f32.mrb[0].mxu0
    %v282 = vadd.f32 %v196, %v281
    %v283 = vpop.f32.mrb[0].mxu0
    %284 = vmatprep.mubr.f32.mxu0 0.0
    %285 = vmatmul.mubr.f32.gmra.mrb[0].mxu0 %v205
    %v286 = vpop.f32.mrb[0].mxu0
    %v287 = vadd.f32 %v196, %v286
    %v288 = vpop.f32.mrb[0].mxu0
    %289 = vmatprep.mubr.f32.mxu0 0.0
    %290 = vmatmul.mubr.f32.gmra.mrb[0].mxu0 %v208
    %v291 = vpop.f32.mrb[0].mxu0
    %v292 = vadd.f32 %v196, %v291
    %v293 = vpop.f32.mrb[0].mxu0
    %294 = vdwg.mxu0
    %v295 = vld [vmem:[#allocation5 + $0x40] sm:$0xff]
    %v296 = vld [vmem:[#allocation5 + $0x48] sm:$0xff]
    %v297 = vld [vmem:[#allocation5 + $0x50] sm:$0xff]
    %v298 = vld [vmem:[#allocation5 + $0x58] sm:$0xff]
    %303 = vrot.lane.b32.xlu0 %v277, 96
    %v304 = vpop.permute.xlu0 %303
    %305 = vrot.lane.b32.xlu0 %v282, 96
    %v306 = vpop.permute.xlu0 %305
    %307 = vrot.lane.b32.xlu0 %v287, 96
    %v308 = vpop.permute.xlu0 %307
    %309 = vrot.lane.b32.xlu0 %v292, 96
    %v310 = vpop.permute.xlu0 %309
    %v311 = vsel %vm197, %v277, 0
    %v313 = vsel %vm197, %v282, 0
    %v315 = vsel %vm197, %v287, 0
    %v317 = vsel %vm197, %v292, 0
    %v319 = vsel %vm197, %v304, 0
    %v321 = vsel %vm197, %v306, 0
    %v323 = vsel %vm197, %v308, 0
    %v325 = vsel %vm197, %v310, 0
    %327 = vmatprep.subr.mxu0 0.0
    %328 = vmatpush1.xpose.msra.mxu0 %v319
    %329 = vmatprep.subr.mxu0 0.0
    %330 = vmatpush1.xpose.msra.mxu0 %v321
    %331 = vmatprep.subr.mxu0 0.0
    %332 = vmatpush1.xpose.msra.mxu0 %v323
    %333 = vmatprep.subr.mxu0 0.0
    %334 = vmatpush1.xpose.msra.mxu0 %v325
    %335 = vmatprep.subr.mxu0 0.0
    %336 = vmatpush1.xpose.msra.mxu0 0.0
    %337 = vmatprep.subr.mxu0 0.0
    %338 = vmatpush1.xpose.msra.mxu0 0.0
    %339 = vmatprep.subr.mxu0 0.0
    %340 = vmatpush1.xpose.msra.mxu0 0.0
    %341 = vmatprep.subr.mxu0 0.0
    %342 = vmatpush1.xpose.msra.mxu0 0.0
    %343 = vmatprep.subr.mxu0 0.0
    %344 = vmatpush1.xpose.msra.mxu0 0.0
    %345 = vmatprep.subr.mxu0 0.0
    %346 = vmatpush1.xpose.msra.mxu0 0.0
    %347 = vmatprep.subr.mxu0 0.0
    %348 = vmatpush1.xpose.msra.mxu0 0.0
    %349 = vmatprep.subr.mxu0 0.0
    %350 = vmatpush1.xpose.msra.mxu0 0.0
    %351 = vmatprep.subr.mxu0 0.0
    %352 = vmatpush1.xpose.msra.mxu0 0.0
    %353 = vmatprep.subr.mxu0 0.0
    %354 = vmatpush1.xpose.msra.mxu0 0.0
    %355 = vmatprep.subr.mxu0 0.0
    %356 = vmatpush1.xpose.msra.mxu0 0.0
    %357 = vmatprep.subr.mxu0 0.0
    %358 = vmatpush1.xpose.msra.mxu0 0.0
    %359 = vmatprep.subr.mxu0 0.0
    %360 = vmatpush1.xpose.msra.mxu0 0.0
    %361 = vmatprep.subr.mxu0 0.0
    %362 = vmatpush1.xpose.msra.mxu0 0.0
    %363 = vmatprep.subr.mxu0 0.0
    %364 = vmatpush1.xpose.msra.mxu0 0.0
    %365 = vmatprep.subr.mxu0 0.0
    %366 = vmatpush1.xpose.msra.mxu0 0.0
    %367 = vmatprep.subr.mxu0 0.0
    %368 = vmatpush1.xpose.msra.mxu0 0.0
    %369 = vmatprep.subr.mxu0 0.0
    %370 = vmatpush1.xpose.msra.mxu0 0.0
    %371 = vmatprep.subr.mxu0 0.0
    %372 = vmatpush1.xpose.msra.mxu0 0.0
    %373 = vmatprep.subr.mxu0 0.0
    %374 = vmatpush1.xpose.msra.mxu0 0.0
    %375 = vmatprep.subr.mxu0 0.0
    %376 = vmatpush1.xpose.msra.mxu0 0.0
    %377 = vmatprep.subr.mxu0 0.0
    %378 = vmatpush1.xpose.msra.mxu0 0.0
    %379 = vmatprep.subr.mxu0 0.0
    %380 = vmatpush1.xpose.msra.mxu0 0.0
    %381 = vmatprep.subr.mxu0 0.0
    %382 = vmatpush1.xpose.msra.mxu0 0.0
    %383 = vmatprep.subr.mxu0 0.0
    %384 = vmatpush1.xpose.msra.mxu0 0.0
    %385 = vmatprep.subr.mxu0 0.0
    %386 = vmatpush1.xpose.msra.mxu0 0.0
    %387 = vmatprep.subr.mxu0 0.0
    %388 = vmatpush1.xpose.msra.mxu0 0.0
    %389 = vmatprep.subr.mxu0 0.0
    %390 = vmatpush1.xpose.msra.mxu0 0.0
    %391 = vmatprep.mubr.f32.mxu0 0.0
    %392 = vmatmul.mubr.f32.gmra.mrb[0].mxu0 %v311
    %v393 = vpop.f32.mrb[0].mxu0
    %v394 = vadd.f32 %v295, %v393
    %v395 = vpop.f32.mrb[0].mxu0
    %396 = vmatprep.mubr.f32.mxu0 0.0
    %397 = vmatmul.mubr.f32.gmra.mrb[0].mxu0 %v313
    %v398 = vpop.f32.mrb[0].mxu0
    %v399 = vadd.f32 %v296, %v398
    %v400 = vpop.f32.mrb[0].mxu0
    %401 = vmatprep.mubr.f32.mxu0 0.0
    %402 = vmatmul.mubr.f32.gmra.mrb[0].mxu0 %v315
    %v403 = vpop.f32.mrb[0].mxu0
    %v404 = vadd.f32 %v297, %v403
    %v405 = vpop.f32.mrb[0].mxu0
    %406 = vmatprep.mubr.f32.mxu0 0.0
    %407 = vmatmul.mubr.f32.gmra.mrb[0].mxu0 %v317
    %v408 = vpop.f32.mrb[0].mxu0
    %v409 = vadd.f32 %v298, %v408
    %v410 = vpop.f32.mrb[0].mxu0
    %411 = vdwg.mxu0
    %v412 = vsel %vm197, %v394, -inf
    %413 = vmax.xlane.f32.xlu0 %v412
    %v414 = vpop.xlane.xlu0 %413
    %v415 = vsel %vm197, %v399, -inf
    %416 = vmax.xlane.f32.xlu0 %v415
    %v417 = vpop.xlane.xlu0 %416
    %v418 = vsel %vm197, %v404, -inf
    %419 = vmax.xlane.f32.xlu0 %v418
    %v420 = vpop.xlane.xlu0 %419
    %v421 = vsel %vm197, %v409, -inf
    %422 = vmax.xlane.f32.xlu0 %v421
    %v423 = vpop.xlane.xlu0 %422
    %v424 = vsub.f32 %v394, %v414
    %v425 = vsub.f32 %v399, %v417
    %v426 = vsub.f32 %v404, %v420
    %v427 = vsub.f32 %v409, %v423
    %v428 = vmul.f32 %v424, 1.442695
    %v429 = vpow.pop %v428
    %v430 = vmul.f32 %v425, 1.442695
    %v431 = vpow.pop %v430
    %v432 = vmul.f32 %v426, 1.442695
    %v433 = vpow.pop %v432
    %v434 = vmul.f32 %v427, 1.442695
    %v435 = vpow.pop %v434
    %v436 = vsel %vm197, %v429, 0.0
    %437 = vadd.xlane.f32.xlu0 %v436
    %v438 = vpop.xlane.xlu0 %437
    %v439 = vsel %vm197, %v431, 0.0
    %440 = vadd.xlane.f32.xlu0 %v439
    %v441 = vpop.xlane.xlu0 %440
    %v442 = vsel %vm197, %v433, 0.0
    %443 = vadd.xlane.f32.xlu0 %v442
    %v444 = vpop.xlane.xlu0 %443
    %v445 = vsel %vm197, %v435, 0.0
    %446 = vadd.xlane.f32.xlu0 %v445
    %v447 = vpop.xlane.xlu0 %446
    %v448 = vrcp.pop %v438
    %v449 = vrcp.pop %v441
    %v450 = vrcp.pop %v444
    %v451 = vrcp.pop %v447
    %v452 = vmul.f32 %v429, %v448
    %v453 = vmul.f32 %v431, %v449
    %v454 = vmul.f32 %v433, %v450
    %v455 = vmul.f32 %v435, %v451
    %456 = vrot.lane.b32.xlu0 %v277, 64
    %v457 = vpop.permute.xlu0 %456
    %458 = vrot.lane.b32.xlu0 %v282, 64
    %v459 = vpop.permute.xlu0 %458
    %460 = vrot.lane.b32.xlu0 %v287, 64
    %v461 = vpop.permute.xlu0 %460
    %462 = vrot.lane.b32.xlu0 %v292, 64
    %v463 = vpop.permute.xlu0 %462
    %v469 = vsel %vm197, %v452, 0
    %v472 = vsel %vm197, %v453, 0
    %v475 = vsel %vm197, %v454, 0
    %v478 = vsel %vm197, %v455, 0
    %480 = vmatprep.subr.mxu0 0.0
    %481 = vmatpush1.msra.mxu0 %v457
    %482 = vmatprep.subr.mxu0 0.0
    %483 = vmatpush1.msra.mxu0 %v459
    %484 = vmatprep.subr.mxu0 0.0
    %485 = vmatpush1.msra.mxu0 %v461
    %486 = vmatprep.subr.mxu0 0.0
    %487 = vmatpush1.msra.mxu0 %v463
    %488 = vmatprep.subr.mxu0 0.0
    %489 = vmatpush1.msra.mxu0 0.0
    %490 = vmatprep.subr.mxu0 0.0
    %491 = vmatpush1.msra.mxu0 0.0
    %492 = vmatprep.subr.mxu0 0.0
    %493 = vmatpush1.msra.mxu0 0.0
    %494 = vmatprep.subr.mxu0 0.0
    %495 = vmatpush1.msra.mxu0 0.0
    %496 = vmatprep.subr.mxu0 0.0
    %497 = vmatpush1.msra.mxu0 0.0
    %498 = vmatprep.subr.mxu0 0.0
    %499 = vmatpush1.msra.mxu0 0.0
    %500 = vmatprep.subr.mxu0 0.0
    %501 = vmatpush1.msra.mxu0 0.0
    %502 = vmatprep.subr.mxu0 0.0
    %503 = vmatpush1.msra.mxu0 0.0
    %504 = vmatprep.subr.mxu0 0.0
    %505 = vmatpush1.msra.mxu0 0.0
    %506 = vmatprep.subr.mxu0 0.0
    %507 = vmatpush1.msra.mxu0 0.0
    %508 = vmatprep.subr.mxu0 0.0
    %509 = vmatpush1.msra.mxu0 0.0
    %510 = vmatprep.subr.mxu0 0.0
    %511 = vmatpush1.msra.mxu0 0.0
    %512 = vmatprep.subr.mxu0 0.0
    %513 = vmatpush1.msra.mxu0 0.0
    %514 = vmatprep.subr.mxu0 0.0
    %515 = vmatpush1.msra.mxu0 0.0
    %516 = vmatprep.subr.mxu0 0.0
    %517 = vmatpush1.msra.mxu0 0.0
    %518 = vmatprep.subr.mxu0 0.0
    %519 = vmatpush1.msra.mxu0 0.0
    %520 = vmatprep.subr.mxu0 0.0
    %521 = vmatpush1.msra.mxu0 0.0
    %522 = vmatprep.subr.mxu0 0.0
    %523 = vmatpush1.msra.mxu0 0.0
    %524 = vmatprep.subr.mxu0 0.0
    %525 = vmatpush1.msra.mxu0 0.0
    %526 = vmatprep.subr.mxu0 0.0
    %527 = vmatpush1.msra.mxu0 0.0
    %528 = vmatprep.subr.mxu0 0.0
    %529 = vmatpush1.msra.mxu0 0.0
    %530 = vmatprep.subr.mxu0 0.0
    %531 = vmatpush1.msra.mxu0 0.0
    %532 = vmatprep.subr.mxu0 0.0
    %533 = vmatpush1.msra.mxu0 0.0
    %534 = vmatprep.subr.mxu0 0.0
    %535 = vmatpush1.msra.mxu0 0.0
    %536 = vmatprep.subr.mxu0 0.0
    %537 = vmatpush1.msra.mxu0 0.0
    %538 = vmatprep.subr.mxu0 0.0
    %539 = vmatpush1.msra.mxu0 0.0
    %540 = vmatprep.subr.mxu0 0.0
    %541 = vmatpush1.msra.mxu0 0.0
    %542 = vmatprep.subr.mxu0 0.0
    %543 = vmatpush1.msra.mxu0 0.0
    %544 = vmatprep.mubr.f32.mxu0 0.0
    %545 = vmatmul.mubr.f32.gmra.mrb[0].mxu0 %v469
    %v546 = vpop.f32.mrb[0].mxu0
    %v547 = vadd.f32 0.0, %v546
    %v548 = vpop.f32.mrb[0].mxu0
    %549 = vmatprep.mubr.f32.mxu0 0.0
    %550 = vmatmul.mubr.f32.gmra.mrb[0].mxu0 %v472
    %v551 = vpop.f32.mrb[0].mxu0
    %v552 = vadd.f32 0.0, %v551
    %v553 = vpop.f32.mrb[0].mxu0
    %554 = vmatprep.mubr.f32.mxu0 0.0
    %555 = vmatmul.mubr.f32.gmra.mrb[0].mxu0 %v475
    %v556 = vpop.f32.mrb[0].mxu0
    %v557 = vadd.f32 0.0, %v556
    %v558 = vpop.f32.mrb[0].mxu0
    %559 = vmatprep.mubr.f32.mxu0 0.0
    %560 = vmatmul.mubr.f32.gmra.mrb[0].mxu0 %v478
    %v561 = vpop.f32.mrb[0].mxu0
    %v562 = vadd.f32 0.0, %v561
    %v563 = vpop.f32.mrb[0].mxu0
    %564 = vdwg.mxu0
    %v565 = vld [vmem:[#allocation5 + $0x41] sm:$0x1]
    %v566 = vlaneseq
    %v567 = vshrl.u32 %v566, 7
    %v568 = vsub.s32 0, %v567
    %v569 = vrot.slane %v565, %v568
    %574 = vrot.lane.b32.xlu0 %v188, 32
    %v575 = vpop.permute.xlu0 %574
    %576 = vrot.lane.b32.xlu0 %v189, 32
    %v577 = vpop.permute.xlu0 %576
    %578 = vrot.lane.b32.xlu0 %v190, 32
    %v579 = vpop.permute.xlu0 %578
    %580 = vrot.lane.b32.xlu0 %v191, 32
    %v581 = vpop.permute.xlu0 %580
    %587 = vrot.lane.b32.xlu0 %v569, 32
    %v588 = vpop.permute.xlu0 %587
    %v591 = vsel %vm197, %v547, 0
    %v594 = vsel %vm197, %v552, 0
    %v597 = vsel %vm197, %v557, 0
    %v600 = vsel %vm197, %v562, 0
    %602 = vmatprep.subr.mxu0 0.0
    %603 = vmatpush1.msra.mxu0 %v575
    %604 = vmatprep.subr.mxu0 0.0
    %605 = vmatpush1.msra.mxu0 %v577
    %606 = vmatprep.subr.mxu0 0.0
    %607 = vmatpush1.msra.mxu0 %v579
    %608 = vmatprep.subr.mxu0 0.0
    %609 = vmatpush1.msra.mxu0 %v581
    %610 = vmatprep.subr.mxu0 0.0
    %611 = vmatpush1.msra.mxu0 0.0
    %612 = vmatprep.subr.mxu0 0.0
    %613 = vmatpush1.msra.mxu0 0.0
    %614 = vmatprep.subr.mxu0 0.0
    %615 = vmatpush1.msra.mxu0 0.0
    %616 = vmatprep.subr.mxu0 0.0
    %617 = vmatpush1.msra.mxu0 0.0
    %618 = vmatprep.subr.mxu0 0.0
    %619 = vmatpush1.msra.mxu0 0.0
    %620 = vmatprep.subr.mxu0 0.0
    %621 = vmatpush1.msra.mxu0 0.0
    %622 = vmatprep.subr.mxu0 0.0
    %623 = vmatpush1.msra.mxu0 0.0
    %624 = vmatprep.subr.mxu0 0.0
    %625 = vmatpush1.msra.mxu0 0.0
    %626 = vmatprep.subr.mxu0 0.0
    %627 = vmatpush1.msra.mxu0 0.0
    %628 = vmatprep.subr.mxu0 0.0
    %629 = vmatpush1.msra.mxu0 0.0
    %630 = vmatprep.subr.mxu0 0.0
    %631 = vmatpush1.msra.mxu0 0.0
    %632 = vmatprep.subr.mxu0 0.0
    %633 = vmatpush1.msra.mxu0 0.0
    %634 = vmatprep.subr.mxu0 0.0
    %635 = vmatpush1.msra.mxu0 0.0
    %636 = vmatprep.subr.mxu0 0.0
    %637 = vmatpush1.msra.mxu0 0.0
    %638 = vmatprep.subr.mxu0 0.0
    %639 = vmatpush1.msra.mxu0 0.0
    %640 = vmatprep.subr.mxu0 0.0
    %641 = vmatpush1.msra.mxu0 0.0
    %642 = vmatprep.subr.mxu0 0.0
    %643 = vmatpush1.msra.mxu0 0.0
    %644 = vmatprep.subr.mxu0 0.0
    %645 = vmatpush1.msra.mxu0 0.0
    %646 = vmatprep.subr.mxu0 0.0
    %647 = vmatpush1.msra.mxu0 0.0
    %648 = vmatprep.subr.mxu0 0.0
    %649 = vmatpush1.msra.mxu0 0.0
    %650 = vmatprep.subr.mxu0 0.0
    %651 = vmatpush1.msra.mxu0 0.0
    %652 = vmatprep.subr.mxu0 0.0
    %653 = vmatpush1.msra.mxu0 0.0
    %654 = vmatprep.subr.mxu0 0.0
    %655 = vmatpush1.msra.mxu0 0.0
    %656 = vmatprep.subr.mxu0 0.0
    %657 = vmatpush1.msra.mxu0 0.0
    %658 = vmatprep.subr.mxu0 0.0
    %659 = vmatpush1.msra.mxu0 0.0
    %660 = vmatprep.subr.mxu0 0.0
    %661 = vmatpush1.msra.mxu0 0.0
    %662 = vmatprep.subr.mxu0 0.0
    %663 = vmatpush1.msra.mxu0 0.0
    %664 = vmatprep.subr.mxu0 0.0
    %665 = vmatpush1.msra.mxu0 0.0
    %666 = vmatprep.mubr.f32.mxu0 0.0
    %667 = vmatmul.mubr.f32.gmra.mrb[0].mxu0 %v591
    %v668 = vpop.f32.mrb[0].mxu0
    %v669 = vadd.f32 %v588, %v668
    %v670 = vpop.f32.mrb[0].mxu0
    %671 = vmatprep.mubr.f32.mxu0 0.0
    %672 = vmatmul.mubr.f32.gmra.mrb[0].mxu0 %v594
    %v673 = vpop.f32.mrb[0].mxu0
    %v674 = vadd.f32 %v588, %v673
    %v675 = vpop.f32.mrb[0].mxu0
    %676 = vmatprep.mubr.f32.mxu0 0.0
    %677 = vmatmul.mubr.f32.gmra.mrb[0].mxu0 %v597
    %v678 = vpop.f32.mrb[0].mxu0
    %v679 = vadd.f32 %v588, %v678
    %v680 = vpop.f32.mrb[0].mxu0
    %681 = vmatprep.mubr.f32.mxu0 0.0
    %682 = vmatmul.mubr.f32.gmra.mrb[0].mxu0 %v600
    %v683 = vpop.f32.mrb[0].mxu0
    %v684 = vadd.f32 %v588, %v683
    %v685 = vpop.f32.mrb[0].mxu0
    %686 = vdwg.mxu0
    %v687 = vadd.f32 %v170, %v669
    %v688 = vadd.f32 %v175, %v674
    %v689 = vadd.f32 %v180, %v679
    %v690 = vadd.f32 %v185, %v684
    %v691 = vld [vmem:[#allocation5 + $0x42] sm:$0x1]
    %v692 = vld [vmem:[#allocation5 + $0x43] sm:$0x1]
    %v693 = vsel %vm197, %v687, 0.0
    %694 = vadd.xlane.f32.xlu0 %v693
    %v695 = vpop.xlane.xlu0 %694
    %v696 = vsel %vm197, %v688, 0.0
    %697 = vadd.xlane.f32.xlu0 %v696
    %v698 = vpop.xlane.xlu0 %697
    %v699 = vsel %vm197, %v689, 0.0
    %700 = vadd.xlane.f32.xlu0 %v699
    %v701 = vpop.xlane.xlu0 %700
    %v702 = vsel %vm197, %v690, 0.0
    %703 = vadd.xlane.f32.xlu0 %v702
    %v704 = vpop.xlane.xlu0 %703
    %v705 = vrcp.pop 32.0
    %v706 = vmul.f32 %v695, %v705
    %v707 = vmul.f32 %v698, %v705
    %v708 = vmul.f32 %v701, %v705
    %v709 = vmul.f32 %v704, %v705
    %v710 = vsub.f32 %v687, %v706
    %v711 = vsub.f32 %v688, %v707
    %v712 = vsub.f32 %v689, %v708
    %v713 = vsub.f32 %v690, %v709
    %v714 = vmul.f32 %v710, %v710
    %v715 = vmul.f32 %v711, %v711
    %v716 = vmul.f32 %v712, %v712
    %v717 = vmul.f32 %v713, %v713
    %v718 = vsel %vm197, %v714, 0.0
    %719 = vadd.xlane.f32.xlu0 %v718
    %v720 = vpop.xlane.xlu0 %719
    %v721 = vsel %vm197, %v715, 0.0
    %722 = vadd.xlane.f32.xlu0 %v721
    %v723 = vpop.xlane.xlu0 %722
    %v724 = vsel %vm197, %v716, 0.0
    %725 = vadd.xlane.f32.xlu0 %v724
    %v726 = vpop.xlane.xlu0 %725
    %v727 = vsel %vm197, %v717, 0.0
    %728 = vadd.xlane.f32.xlu0 %v727
    %v729 = vpop.xlane.xlu0 %728
    %v730 = vmul.f32 %v720, %v705
    %v731 = vmul.f32 %v723, %v705
    %v732 = vmul.f32 %v726, %v705
    %v733 = vmul.f32 %v729, %v705
    %v734 = vadd.f32 %v730, 1e-05
    %v735 = vadd.f32 %v731, 1e-05
    %v736 = vadd.f32 %v732, 1e-05
    %v737 = vadd.f32 %v733, 1e-05
    %v738 = vrsqrt.pop %v734
    %v739 = vrsqrt.pop %v735
    %v740 = vrsqrt.pop %v736
    %v741 = vrsqrt.pop %v737
    %v742 = vmul.f32 %v710, %v738
    %v743 = vmul.f32 %v711, %v739
    %v744 = vmul.f32 %v712, %v740
    %v745 = vmul.f32 %v713, %v741
    %v746 = vlaneseq
    %v747 = vshrl.u32 %v746, 7
    %v748 = vsub.s32 0, %v747
    %v749 = vrot.slane %v691, %v748
    %751 = vrot.lane.b32.xlu0 %v749, 32
    %v752 = vpop.permute.xlu0 %751
    %v754 = vmul.f32 %v742, %v752
    %v755 = vmul.f32 %v743, %v752
    %v756 = vmul.f32 %v744, %v752
    %v757 = vmul.f32 %v745, %v752
    %v758 = vlaneseq
    %v759 = vshrl.u32 %v758, 7
    %v760 = vsub.s32 0, %v759
    %v761 = vrot.slane %v692, %v760
    %763 = vrot.lane.b32.xlu0 %v761, 32
    %v764 = vpop.permute.xlu0 %763
    %v766 = vadd.f32 %v754, %v764
    %v767 = vadd.f32 %v755, %v764
    %v768 = vadd.f32 %v756, %v764
    %v769 = vadd.f32 %v757, %v764
    %v770 = vld [vmem:[#allocation5 + $0x20] sm:$0xff]
    %v771 = vld [vmem:[#allocation5 + $0x28] sm:$0xff]
    %v772 = vld [vmem:[#allocation5 + $0x30] sm:$0xff]
    %v773 = vld [vmem:[#allocation5 + $0x38] sm:$0xff]
    %v774 = vld [vmem:[#allocation5 + $0x61] sm:$0x1]
    %v775 = vlaneseq
    %v776 = vshrl.u32 %v775, 7
    %v777 = vsub.s32 0, %v776
    %v778 = vrot.slane %v774, %v777
    %v780 = vsel %vm197, %v766, 0
    %v783 = vsel %vm197, %v767, 0
    %v786 = vsel %vm197, %v768, 0
    %v789 = vsel %vm197, %v769, 0
    %791 = vmatprep.subr.mxu0 0.0
    %792 = vmatpush1.msra.mxu0 %v770
    %793 = vmatprep.subr.mxu0 0.0
    %794 = vmatpush1.msra.mxu0 %v771
    %795 = vmatprep.subr.mxu0 0.0
    %796 = vmatpush1.msra.mxu0 %v772
    %797 = vmatprep.subr.mxu0 0.0
    %798 = vmatpush1.msra.mxu0 %v773
    %799 = vmatprep.subr.mxu0 0.0
    %800 = vmatpush1.msra.mxu0 0.0
    %801 = vmatprep.subr.mxu0 0.0
    %802 = vmatpush1.msra.mxu0 0.0
    %803 = vmatprep.subr.mxu0 0.0
    %804 = vmatpush1.msra.mxu0 0.0
    %805 = vmatprep.subr.mxu0 0.0
    %806 = vmatpush1.msra.mxu0 0.0
    %807 = vmatprep.subr.mxu0 0.0
    %808 = vmatpush1.msra.mxu0 0.0
    %809 = vmatprep.subr.mxu0 0.0
    %810 = vmatpush1.msra.mxu0 0.0
    %811 = vmatprep.subr.mxu0 0.0
    %812 = vmatpush1.msra.mxu0 0.0
    %813 = vmatprep.subr.mxu0 0.0
    %814 = vmatpush1.msra.mxu0 0.0
    %815 = vmatprep.subr.mxu0 0.0
    %816 = vmatpush1.msra.mxu0 0.0
    %817 = vmatprep.subr.mxu0 0.0
    %818 = vmatpush1.msra.mxu0 0.0
    %819 = vmatprep.subr.mxu0 0.0
    %820 = vmatpush1.msra.mxu0 0.0
    %821 = vmatprep.subr.mxu0 0.0
    %822 = vmatpush1.msra.mxu0 0.0
    %823 = vmatprep.subr.mxu0 0.0
    %824 = vmatpush1.msra.mxu0 0.0
    %825 = vmatprep.subr.mxu0 0.0
    %826 = vmatpush1.msra.mxu0 0.0
    %827 = vmatprep.subr.mxu0 0.0
    %828 = vmatpush1.msra.mxu0 0.0
    %829 = vmatprep.subr.mxu0 0.0
    %830 = vmatpush1.msra.mxu0 0.0
    %831 = vmatprep.subr.mxu0 0.0
    %832 = vmatpush1.msra.mxu0 0.0
    %833 = vmatprep.subr.mxu0 0.0
    %834 = vmatpush1.msra.mxu0 0.0
    %835 = vmatprep.subr.mxu0 0.0
    %836 = vmatpush1.msra.mxu0 0.0
    %837 = vmatprep.subr.mxu0 0.0
    %838 = vmatpush1.msra.mxu0 0.0
    %839 = vmatprep.subr.mxu0 0.0
    %840 = vmatpush1.msra.mxu0 0.0
    %841 = vmatprep.subr.mxu0 0.0
    %842 = vmatpush1.msra.mxu0 0.0
    %843 = vmatprep.subr.mxu0 0.0
    %844 = vmatpush1.msra.mxu0 0.0
    %845 = vmatprep.subr.mxu0 0.0
    %846 = vmatpush1.msra.mxu0 0.0
    %847 = vmatprep.subr.mxu0 0.0
    %848 = vmatpush1.msra.mxu0 0.0
    %849 = vmatprep.subr.mxu0 0.0
    %850 = vmatpush1.msra.mxu0 0.0
    %851 = vmatprep.subr.mxu0 0.0
    %852 = vmatpush1.msra.mxu0 0.0
    %853 = vmatprep.subr.mxu0 0.0
    %854 = vmatpush1.msra.mxu0 0.0
    %855 = vmatprep.mubr.f32.mxu0 0.0
    %856 = vmatmul.mubr.f32.gmra.mrb[0].mxu0 %v780
    %v857 = vpop.f32.mrb[0].mxu0
    %v858 = vadd.f32 %v778, %v857
    %v859 = vpop.f32.mrb[0].mxu0
    %860 = vmatprep.mubr.f32.mxu0 0.0
    %861 = vmatmul.mubr.f32.gmra.mrb[0].mxu0 %v783
    %v862 = vpop.f32.mrb[0].mxu0
    %v863 = vadd.f32 %v778, %v862
    %v864 = vpop.f32.mrb[0].mxu0
    %865 = vmatprep.mubr.f32.mxu0 0.0
    %866 = vmatmul.mubr.f32.gmra.mrb[0].mxu0 %v786
    %v867 = vpop.f32.mrb[0].mxu0
    %v868 = vadd.f32 %v778, %v867
    %v869 = vpop.f32.mrb[0].mxu0
    %870 = vmatprep.mubr.f32.mxu0 0.0
    %871 = vmatmul.mubr.f32.gmra.mrb[0].mxu0 %v789
    %v872 = vpop.f32.mrb[0].mxu0
    %v873 = vadd.f32 %v778, %v872
    %v874 = vpop.f32.mrb[0].mxu0
    %875 = vdwg.mxu0
    %v876 = vmax.f32 %v858, 0.0
    %v877 = vmax.f32 %v863, 0.0
    %v878 = vmax.f32 %v868, 0.0
    %v879 = vmax.f32 %v873, 0.0
    %v880 = vld [vmem:[#allocation5 + $0x44] sm:$0x1]
    %v881 = vlaneseq
    %v882 = vshrl.u32 %v881, 7
    %v883 = vsub.s32 0, %v882
    %v884 = vrot.slane %v880, %v883
    %889 = vrot.lane.b32.xlu0 %v770, 64
    %v890 = vpop.permute.xlu0 %889
    %891 = vrot.lane.b32.xlu0 %v771, 64
    %v892 = vpop.permute.xlu0 %891
    %893 = vrot.lane.b32.xlu0 %v772, 64
    %v894 = vpop.permute.xlu0 %893
    %895 = vrot.lane.b32.xlu0 %v773, 64
    %v896 = vpop.permute.xlu0 %895
    %898 = vrot.lane.b32.xlu0 %v884, 32
    %v899 = vpop.permute.xlu0 %898
    %vm901 = vcmask 523264
    %v903 = vsel %vm901, %v876, 0
    %v906 = vsel %vm901, %v877, 0
    %v909 = vsel %vm901, %v878, 0
    %v912 = vsel %vm901, %v879, 0
    %v914 = vsel %vm901, %v890, 0
    %v916 = vsel %vm901, %v892, 0
    %v918 = vsel %vm901, %v894, 0
    %v920 = vsel %vm901, %v896, 0
    %922 = vmatprep.subr.mxu0 0.0
    %923 = vmatpush1.xpose.msra.mxu0 %v914
    %924 = vmatprep.subr.mxu0 0.0
    %925 = vmatpush1.xpose.msra.mxu0 %v916
    %926 = vmatprep.subr.mxu0 0.0
    %927 = vmatpush1.xpose.msra.mxu0 %v918
    %928 = vmatprep.subr.mxu0 0.0
    %929 = vmatpush1.xpose.msra.mxu0 %v920
    %930 = vmatprep.subr.mxu0 0.0
    %931 = vmatpush1.xpose.msra.mxu0 0.0
    %932 = vmatprep.subr.mxu0 0.0
    %933 = vmatpush1.xpose.msra.mxu0 0.0
    %934 = vmatprep.subr.mxu0 0.0
    %935 = vmatpush1.xpose.msra.mxu0 0.0
    %936 = vmatprep.subr.mxu0 0.0
    %937 = vmatpush1.xpose.msra.mxu0 0.0
    %938 = vmatprep.subr.mxu0 0.0
    %939 = vmatpush1.xpose.msra.mxu0 0.0
    %940 = vmatprep.subr.mxu0 0.0
    %941 = vmatpush1.xpose.msra.mxu0 0.0
    %942 = vmatprep.subr.mxu0 0.0
    %943 = vmatpush1.xpose.msra.mxu0 0.0
    %944 = vmatprep.subr.mxu0 0.0
    %945 = vmatpush1.xpose.msra.mxu0 0.0
    %946 = vmatprep.subr.mxu0 0.0
    %947 = vmatpush1.xpose.msra.mxu0 0.0
    %948 = vmatprep.subr.mxu0 0.0
    %949 = vmatpush1.xpose.msra.mxu0 0.0
    %950 = vmatprep.subr.mxu0 0.0
    %951 = vmatpush1.xpose.msra.mxu0 0.0
    %952 = vmatprep.subr.mxu0 0.0
    %953 = vmatpush1.xpose.msra.mxu0 0.0
    %954 = vmatprep.subr.mxu0 0.0
    %955 = vmatpush1.xpose.msra.mxu0 0.0
    %956 = vmatprep.subr.mxu0 0.0
    %957 = vmatpush1.xpose.msra.mxu0 0.0
    %958 = vmatprep.subr.mxu0 0.0
    %959 = vmatpush1.xpose.msra.mxu0 0.0
    %960 = vmatprep.subr.mxu0 0.0
    %961 = vmatpush1.xpose.msra.mxu0 0.0
    %962 = vmatprep.subr.mxu0 0.0
    %963 = vmatpush1.xpose.msra.mxu0 0.0
    %964 = vmatprep.subr.mxu0 0.0
    %965 = vmatpush1.xpose.msra.mxu0 0.0
    %966 = vmatprep.subr.mxu0 0.0
    %967 = vmatpush1.xpose.msra.mxu0 0.0
    %968 = vmatprep.subr.mxu0 0.0
    %969 = vmatpush1.xpose.msra.mxu0 0.0
    %970 = vmatprep.subr.mxu0 0.0
    %971 = vmatpush1.xpose.msra.mxu0 0.0
    %972 = vmatprep.subr.mxu0 0.0
    %973 = vmatpush1.xpose.msra.mxu0 0.0
    %974 = vmatprep.subr.mxu0 0.0
    %975 = vmatpush1.xpose.msra.mxu0 0.0
    %976 = vmatprep.subr.mxu0 0.0
    %977 = vmatpush1.xpose.msra.mxu0 0.0
    %978 = vmatprep.subr.mxu0 0.0
    %979 = vmatpush1.xpose.msra.mxu0 0.0
    %980 = vmatprep.subr.mxu0 0.0
    %981 = vmatpush1.xpose.msra.mxu0 0.0
    %982 = vmatprep.subr.mxu0 0.0
    %983 = vmatpush1.xpose.msra.mxu0 0.0
    %984 = vmatprep.subr.mxu0 0.0
    %985 = vmatpush1.xpose.msra.mxu0 0.0
    %986 = vmatprep.mubr.f32.mxu0 0.0
    %987 = vmatmul.mubr.f32.gmra.mrb[0].mxu0 %v903
    %v988 = vpop.f32.mrb[0].mxu0
    %v989 = vadd.f32 %v899, %v988
    %v990 = vpop.f32.mrb[0].mxu0
    %991 = vmatprep.mubr.f32.mxu0 0.0
    %992 = vmatmul.mubr.f32.gmra.mrb[0].mxu0 %v906
    %v993 = vpop.f32.mrb[0].mxu0
    %v994 = vadd.f32 %v899, %v993
    %v995 = vpop.f32.mrb[0].mxu0
    %996 = vmatprep.mubr.f32.mxu0 0.0
    %997 = vmatmul.mubr.f32.gmra.mrb[0].mxu0 %v909
    %v998 = vpop.f32.mrb[0].mxu0
    %v999 = vadd.f32 %v899, %v998
    %v1000 = vpop.f32.mrb[0].mxu0
    %1001 = vmatprep.mubr.f32.mxu0 0.0
    %1002 = vmatmul.mubr.f32.gmra.mrb[0].mxu0 %v912
    %v1003 = vpop.f32.mrb[0].mxu0
    %v1004 = vadd.f32 %v899, %v1003
    %v1005 = vpop.f32.mrb[0].mxu0
    %1006 = vdwg.mxu0
    %v1007 = vadd.f32 %v766, %v989
    %v1008 = vadd.f32 %v767, %v994
    %v1009 = vadd.f32 %v768, %v999
    %v1010 = vadd.f32 %v769, %v1004
    %v1011 = vld [vmem:[#allocation5 + $0x45] sm:$0x1]
    %v1012 = vld [vmem:[#allocation5 + $0x46] sm:$0x1]
    %v1013 = vsel %vm197, %v1007, 0.0
    %1014 = vadd.xlane.f32.xlu0 %v1013
    %v1015 = vpop.xlane.xlu0 %1014
    %v1016 = vsel %vm197, %v1008, 0.0
    %1017 = vadd.xlane.f32.xlu0 %v1016
    %v1018 = vpop.xlane.xlu0 %1017
    %v1019 = vsel %vm197, %v1009, 0.0
    %1020 = vadd.xlane.f32.xlu0 %v1019
    %v1021 = vpop.xlane.xlu0 %1020
    %v1022 = vsel %vm197, %v1010, 0.0
    %1023 = vadd.xlane.f32.xlu0 %v1022
    %v1024 = vpop.xlane.xlu0 %1023
    %v1025 = vmul.f32 %v1015, %v705
    %v1026 = vmul.f32 %v1018, %v705
    %v1027 = vmul.f32 %v1021, %v705
    %v1028 = vmul.f32 %v1024, %v705
    %v1029 = vsub.f32 %v1007, %v1025
    %v1030 = vsub.f32 %v1008, %v1026
    %v1031 = vsub.f32 %v1009, %v1027
    %v1032 = vsub.f32 %v1010, %v1028
    %v1033 = vmul.f32 %v1029, %v1029
    %v1034 = vmul.f32 %v1030, %v1030
    %v1035 = vmul.f32 %v1031, %v1031
    %v1036 = vmul.f32 %v1032, %v1032
    %v1037 = vsel %vm197, %v1033, 0.0
    %1038 = vadd.xlane.f32.xlu0 %v1037
    %v1039 = vpop.xlane.xlu0 %1038
    %v1040 = vsel %vm197, %v1034, 0.0
    %1041 = vadd.xlane.f32.xlu0 %v1040
    %v1042 = vpop.xlane.xlu0 %1041
    %v1043 = vsel %vm197, %v1035, 0.0
    %1044 = vadd.xlane.f32.xlu0 %v1043
    %v1045 = vpop.xlane.xlu0 %1044
    %v1046 = vsel %vm197, %v1036, 0.0
    %1047 = vadd.xlane.f32.xlu0 %v1046
    %v1048 = vpop.xlane.xlu0 %1047
    %v1049 = vmul.f32 %v1039, %v705
    %v1050 = vmul.f32 %v1042, %v705
    %v1051 = vmul.f32 %v1045, %v705
    %v1052 = vmul.f32 %v1048, %v705
    %v1053 = vadd.f32 %v1049, 1e-05
    %v1054 = vadd.f32 %v1050, 1e-05
    %v1055 = vadd.f32 %v1051, 1e-05
    %v1056 = vadd.f32 %v1052, 1e-05
    %v1057 = vrsqrt.pop %v1053
    %v1058 = vrsqrt.pop %v1054
    %v1059 = vrsqrt.pop %v1055
    %v1060 = vrsqrt.pop %v1056
    %v1061 = vmul.f32 %v1029, %v1057
    %v1062 = vmul.f32 %v1030, %v1058
    %v1063 = vmul.f32 %v1031, %v1059
    %v1064 = vmul.f32 %v1032, %v1060
    %v1065 = vlaneseq
    %v1066 = vshrl.u32 %v1065, 7
    %v1067 = vsub.s32 0, %v1066
    %v1068 = vrot.slane %v1011, %v1067
    %1070 = vrot.lane.b32.xlu0 %v1068, 32
    %v1071 = vpop.permute.xlu0 %1070
    %v1073 = vmul.f32 %v1061, %v1071
    %v1074 = vmul.f32 %v1062, %v1071
    %v1075 = vmul.f32 %v1063, %v1071
    %v1076 = vmul.f32 %v1064, %v1071
    %v1077 = vlaneseq
    %v1078 = vshrl.u32 %v1077, 7
    %v1079 = vsub.s32 0, %v1078
    %v1080 = vrot.slane %v1012, %v1079
    %1082 = vrot.lane.b32.xlu0 %v1080, 32
    %v1083 = vpop.permute.xlu0 %1082
    %v1085 = vadd.f32 %v1073, %v1083
    %v1086 = vadd.f32 %v1074, %v1083
    %v1087 = vadd.f32 %v1075, %v1083
    %v1088 = vadd.f32 %v1076, %v1083
    %v1089 = vld [vmem:[#allocation5 + $0x47] sm:$0x1]
    %v1090 = vlaneseq
    %v1091 = vshrl.u32 %v1090, 7
    %v1092 = vsub.s32 0, %v1091
    %v1093 = vrot.slane %v1089, %v1092
    %1095 = vrot.lane.b32.xlu0 %v1093, 32
    %v1096 = vpop.permute.xlu0 %1095
    %v1098 = vmul.f32 %v1085, %v1096
    %v1099 = vmul.f32 %v1086, %v1096
    %v1100 = vmul.f32 %v1087, %v1096
    %v1101 = vmul.f32 %v1088, %v1096
    %v1102 = vsel %vm197, %v1098, 0.0
    %1103 = vadd.xlane.f32.xlu0 %v1102
    %v1104 = vpop.xlane.xlu0 %1103
    %v1105 = vsel %vm197, %v1099, 0.0
    %1106 = vadd.xlane.f32.xlu0 %v1105
    %v1107 = vpop.xlane.xlu0 %1106
    %v1108 = vsel %vm197, %v1100, 0.0
    %1109 = vadd.xlane.f32.xlu0 %v1108
    %v1110 = vpop.xlane.xlu0 %1109
    %v1111 = vsel %vm197, %v1101, 0.0
    %1112 = vadd.xlane.f32.xlu0 %v1111
    %v1113 = vpop.xlane.xlu0 %1112
    %v1114 = vld [vmem:[#allocation5 + $0x5a] sm:$0x1]
    %v1115 = vlaneseq
    %v1116 = vshrl.u32 %v1115, 7
    %v1117 = vsub.s32 0, %v1116
    %v1118 = vrot.slane %v1114, %v1117
    %v1119 = vadd.f32 %v1104, %v1118
    %v1120 = vadd.f32 %v1107, %v1118
    %v1121 = vadd.f32 %v1110, %v1118
    %v1122 = vadd.f32 %v1113, %v1118
    %v1123 = vld [vmem:[#allocation5 + $0x44] sm:$0x3]
    %1125 = vset.pattern.permute.xlu0 64
    %1126 = vperm.xlu0 %1125, %v1119
    %v1127 = vpop.permute.xlu0 %1126
    %1130 = vset.pattern.permute.xlu0 64
    %1131 = vperm.xlu0 %1130, %v1120
    %v1132 = vpop.permute.xlu0 %1131
    %1135 = vset.pattern.permute.xlu0 64
    %1136 = vperm.xlu0 %1135, %v1121
    %v1137 = vpop.permute.xlu0 %1136
    %1140 = vset.pattern.permute.xlu0 64
    %1141 = vperm.xlu0 %1140, %v1122
    %v1142 = vpop.permute.xlu0 %1141
    %v1144 = vmul.f32 %v1127, %v295
    %v1145 = vmul.f32 %v1132, %v296
    %v1146 = vmul.f32 %v1137, %v297
    %v1147 = vmul.f32 %v1142, %v298
    %v1148 = vld [vmem:[#allocation5 + $0x48] sm:$0x1]
    %v1149 = vlaneseq
    %v1150 = vshrl.u32 %v1149, 7
    %v1151 = vsub.s32 0, %v1150
    %v1152 = vrot.slane %v1148, %v1151
    %1154 = vrot.lane.b32.xlu0 %v1123, 64
    %v1155 = vpop.permute.xlu0 %1154
    %1160 = vrot.lane.b32.xlu0 %v1144, 96
    %v1161 = vpop.permute.xlu0 %1160
    %1162 = vrot.lane.b32.xlu0 %v1145, 96
    %v1163 = vpop.permute.xlu0 %1162
    %1164 = vrot.lane.b32.xlu0 %v1146, 96
    %v1165 = vpop.permute.xlu0 %1164
    %1166 = vrot.lane.b32.xlu0 %v1147, 96
    %v1167 = vpop.permute.xlu0 %1166
    %1173 = vrot.lane.b32.xlu0 %v1152, 32
    %v1174 = vpop.permute.xlu0 %1173
    %v1176 = vsel %vm197, %v1155, 0
    %1178 = vmatprep.subr.mxu0 0.0
    %1179 = vmatpush1.msra.mxu0 %v1161
    %1180 = vmatprep.subr.mxu0 0.0
    %1181 = vmatpush1.msra.mxu0 %v1163
    %1182 = vmatprep.subr.mxu0 0.0
    %1183 = vmatpush1.msra.mxu0 %v1165
    %1184 = vmatprep.subr.mxu0 0.0
    %1185 = vmatpush1.msra.mxu0 %v1167
    %1186 = vmatprep.subr.mxu0 0.0
    %1187 = vmatpush1.msra.mxu0 0.0
    %1188 = vmatprep.subr.mxu0 0.0
    %1189 = vmatpush1.msra.mxu0 0.0
    %1190 = vmatprep.subr.mxu0 0.0
    %1191 = vmatpush1.msra.mxu0 0.0
    %1192 = vmatprep.subr.mxu0 0.0
    %1193 = vmatpush1.msra.mxu0 0.0
    %1194 = vmatprep.subr.mxu0 0.0
    %1195 = vmatpush1.msra.mxu0 0.0
    %1196 = vmatprep.subr.mxu0 0.0
    %1197 = vmatpush1.msra.mxu0 0.0
    %1198 = vmatprep.subr.mxu0 0.0
    %1199 = vmatpush1.msra.mxu0 0.0
    %1200 = vmatprep.subr.mxu0 0.0
    %1201 = vmatpush1.msra.mxu0 0.0
    %1202 = vmatprep.subr.mxu0 0.0
    %1203 = vmatpush1.msra.mxu0 0.0
    %1204 = vmatprep.subr.mxu0 0.0
    %1205 = vmatpush1.msra.mxu0 0.0
    %1206 = vmatprep.subr.mxu0 0.0
    %1207 = vmatpush1.msra.mxu0 0.0
    %1208 = vmatprep.subr.mxu0 0.0
    %1209 = vmatpush1.msra.mxu0 0.0
    %1210 = vmatprep.subr.mxu0 0.0
    %1211 = vmatpush1.msra.mxu0 0.0
    %1212 = vmatprep.subr.mxu0 0.0
    %1213 = vmatpush1.msra.mxu0 0.0
    %1214 = vmatprep.subr.mxu0 0.0
    %1215 = vmatpush1.msra.mxu0 0.0
    %1216 = vmatprep.subr.mxu0 0.0
    %1217 = vmatpush1.msra.mxu0 0.0
    %1218 = vmatprep.subr.mxu0 0.0
    %1219 = vmatpush1.msra.mxu0 0.0
    %1220 = vmatprep.subr.mxu0 0.0
    %1221 = vmatpush1.msra.mxu0 0.0
    %1222 = vmatprep.subr.mxu0 0.0
    %1223 = vmatpush1.msra.mxu0 0.0
    %1224 = vmatprep.subr.mxu0 0.0
    %1225 = vmatpush1.msra.mxu0 0.0
    %1226 = vmatprep.subr.mxu0 0.0
    %1227 = vmatpush1.msra.mxu0 0.0
    %1228 = vmatprep.subr.mxu0 0.0
    %1229 = vmatpush1.msra.mxu0 0.0
    %1230 = vmatprep.subr.mxu0 0.0
    %1231 = vmatpush1.msra.mxu0 0.0
    %1232 = vmatprep.subr.mxu0 0.0
    %1233 = vmatpush1.msra.mxu0 0.0
    %1234 = vmatprep.subr.mxu0 0.0
    %1235 = vmatpush1.msra.mxu0 0.0
    %1236 = vmatprep.subr.mxu0 0.0
    %1237 = vmatpush1.msra.mxu0 0.0
    %1238 = vmatprep.subr.mxu0 0.0
    %1239 = vmatpush1.msra.mxu0 0.0
    %1240 = vmatprep.subr.mxu0 0.0
    %1241 = vmatpush1.msra.mxu0 0.0
    %1242 = vmatprep.mubr.f32.mxu0 0.0
    %1243 = vmatmul.mubr.f32.gmra.mrb[0].mxu0 %v1176
    %v1244 = vpop.f32.mrb[0].mxu0
    %v1245 = vadd.f32 %v1174, %v1244
    %v1246 = vpop.f32.mrb[0].mxu0
    %1247 = vdwg.mxu0
    %v1248 = vmax.f32 %v1245, 0.0
    %v1249 = vlaneseq
    %v1250 = vshrl.u32 %v1249, 7
    %vm1251 = vcmp.eq.s32.totalorder %v1250, 0
    %s1252 = sld [smem:[#allocation2]]
    %v1253 = vstv %s1252
    %v1254 = vsel %vm1251, %v1253, 0.0
    %vm1255 = vcmp.eq.s32.totalorder %v1250, 1
    %s1256 = sld [smem:[#allocation2 + $0x1]]
    %v1257 = vstv %s1256
    %v1258 = vsel %vm1255, %v1257, %v1254
    %v1259 = vmul.f32 %v1258, 1.442695
    %v1260 = vpow.pop %v1259
    %v1261 = vmul.f32 %v1260, 5.0
    %v1262 = vld [vmem:[#allocation5 + $0x46] sm:$0xff]
    %v1263 = vld [vmem:[#allocation5 + $0x4e] sm:$0x7f]
    %v1264 = vld [vmem:[#allocation5 + $0x59] sm:$0x1]
    %v1265 = vlaneseq
    %v1266 = vshrl.u32 %v1265, 7
    %v1267 = vsub.s32 0, %v1266
    %v1268 = vrot.slane %v1264, %v1267
    %v1269 = vmul.f32 %v1261, %v1268
    %1272 = vrot.lane.b32.xlu0 %v1262, 64
    %v1273 = vpop.permute.xlu0 %1272
    %1274 = vrot.lane.b32.xlu0 %v1263, 64
    %v1275 = vpop.permute.xlu0 %1274
    %1278 = vrot.lane.b32.xlu0 %v1269, 64
    %v1279 = vpop.permute.xlu0 %1278
    %vm1281 = vcmask 121856
    %v1283 = vsel %vm1281, %v1248, 0
    %vm1285 = vcmask 1046528
    %v1286 = vsel %vm1285, %v1275, 0
    %1288 = vmatprep.subr.mxu0 0.0
    %1289 = vmatpush1.msra.mxu0 %v1273
    %1290 = vmatprep.subr.mxu0 0.0
    %1291 = vmatpush1.msra.mxu0 %v1286
    %1292 = vmatprep.subr.mxu0 0.0
    %1293 = vmatpush1.msra.mxu0 0.0
    %1294 = vmatprep.subr.mxu0 0.0
    %1295 = vmatpush1.msra.mxu0 0.0
    %1296 = vmatprep.subr.mxu0 0.0
    %1297 = vmatpush1.msra.mxu0 0.0
    %1298 = vmatprep.subr.mxu0 0.0
    %1299 = vmatpush1.msra.mxu0 0.0
    %1300 = vmatprep.subr.mxu0 0.0
    %1301 = vmatpush1.msra.mxu0 0.0
    %1302 = vmatprep.subr.mxu0 0.0
    %1303 = vmatpush1.msra.mxu0 0.0
    %1304 = vmatprep.subr.mxu0 0.0
    %1305 = vmatpush1.msra.mxu0 0.0
    %1306 = vmatprep.subr.mxu0 0.0
    %1307 = vmatpush1.msra.mxu0 0.0
    %1308 = vmatprep.subr.mxu0 0.0
    %1309 = vmatpush1.msra.mxu0 0.0
    %1310 = vmatprep.subr.mxu0 0.0
    %1311 = vmatpush1.msra.mxu0 0.0
    %1312 = vmatprep.subr.mxu0 0.0
    %1313 = vmatpush1.msra.mxu0 0.0
    %1314 = vmatprep.subr.mxu0 0.0
    %1315 = vmatpush1.msra.mxu0 0.0
    %1316 = vmatprep.subr.mxu0 0.0
    %1317 = vmatpush1.msra.mxu0 0.0
    %1318 = vmatprep.subr.mxu0 0.0
    %1319 = vmatpush1.msra.mxu0 0.0
    %1320 = vmatprep.subr.mxu0 0.0
    %1321 = vmatpush1.msra.mxu0 0.0
    %1322 = vmatprep.subr.mxu0 0.0
    %1323 = vmatpush1.msra.mxu0 0.0
    %1324 = vmatprep.subr.mxu0 0.0
    %1325 = vmatpush1.msra.mxu0 0.0
    %1326 = vmatprep.subr.mxu0 0.0
    %1327 = vmatpush1.msra.mxu0 0.0
    %1328 = vmatprep.subr.mxu0 0.0
    %1329 = vmatpush1.msra.mxu0 0.0
    %1330 = vmatprep.subr.mxu0 0.0
    %1331 = vmatpush1.msra.mxu0 0.0
    %1332 = vmatprep.subr.mxu0 0.0
    %1333 = vmatpush1.msra.mxu0 0.0
    %1334 = vmatprep.subr.mxu0 0.0
    %1335 = vmatpush1.msra.mxu0 0.0
    %1336 = vmatprep.subr.mxu0 0.0
    %1337 = vmatpush1.msra.mxu0 0.0
    %1338 = vmatprep.subr.mxu0 0.0
    %1339 = vmatpush1.msra.mxu0 0.0
    %1340 = vmatprep.subr.mxu0 0.0
    %1341 = vmatpush1.msra.mxu0 0.0
    %1342 = vmatprep.subr.mxu0 0.0
    %1343 = vmatpush1.msra.mxu0 0.0
    %1344 = vmatprep.subr.mxu0 0.0
    %1345 = vmatpush1.msra.mxu0 0.0
    %1346 = vmatprep.subr.mxu0 0.0
    %1347 = vmatpush1.msra.mxu0 0.0
    %1348 = vmatprep.subr.mxu0 0.0
    %1349 = vmatpush1.msra.mxu0 0.0
    %1350 = vmatprep.subr.mxu0 0.0
    %1351 = vmatpush1.msra.mxu0 0.0
    %1352 = vmatprep.mubr.f32.mxu0 0.0
    %1353 = vmatmul.mubr.f32.gmra.mrb[0].mxu0 %v1283
    %v1354 = vpop.f32.mrb[0].mxu0
    %v1355 = vadd.f32 %v1279, %v1354
    %v1356 = vpop.f32.mrb[0].mxu0
    %1357 = vdwg.mxu0
    %v1358 = vld [vmem:[#allocation5 + $0x49] sm:$0x1]
    %v1359 = vlaneseq
    %v1360 = vshrl.u32 %v1359, 7
    %v1361 = vsub.s32 0, %v1360
    %v1362 = vrot.slane %v1358, %v1361
    %1364 = vrot.lane.b32.xlu0 %v1362, 32
    %v1365 = vpop.permute.xlu0 %1364
    %v1367 = vadd.f32 %v1355, %v1365
    %v1368 = vmax.f32 %v1367, 0.0
    %v1369 = vld [vmem:[#allocation5 + $0x55] sm:$0xf]
    %v1370 = vld [vmem:[#allocation5 + $0x4a] sm:$0x1]
    %v1371 = vlaneseq
    %v1372 = vshrl.u32 %v1371, 7
    %v1373 = vsub.s32 0, %v1372
    %v1374 = vrot.slane %v1370, %v1373
    %1376 = vrot.lane.b32.xlu0 %v1369, 64
    %v1377 = vpop.permute.xlu0 %1376
    %1379 = vrot.lane.b32.xlu0 %v1374, 32
    %v1380 = vpop.permute.xlu0 %1379
    %v1383 = vsel %vm87, %v1368, 0
    %v1385 = vsel %vm100, %v1377, 0
    %1387 = vmatprep.subr.mxu0 0.0
    %1388 = vmatpush1.msra.mxu0 %v1385
    %1389 = vmatprep.subr.mxu0 0.0
    %1390 = vmatpush1.msra.mxu0 0.0
    %1391 = vmatprep.subr.mxu0 0.0
    %1392 = vmatpush1.msra.mxu0 0.0
    %1393 = vmatprep.subr.mxu0 0.0
    %1394 = vmatpush1.msra.mxu0 0.0
    %1395 = vmatprep.subr.mxu0 0.0
    %1396 = vmatpush1.msra.mxu0 0.0
    %1397 = vmatprep.subr.mxu0 0.0
    %1398 = vmatpush1.msra.mxu0 0.0
    %1399 = vmatprep.subr.mxu0 0.0
    %1400 = vmatpush1.msra.mxu0 0.0
    %1401 = vmatprep.subr.mxu0 0.0
    %1402 = vmatpush1.msra.mxu0 0.0
    %1403 = vmatprep.subr.mxu0 0.0
    %1404 = vmatpush1.msra.mxu0 0.0
    %1405 = vmatprep.subr.mxu0 0.0
    %1406 = vmatpush1.msra.mxu0 0.0
    %1407 = vmatprep.subr.mxu0 0.0
    %1408 = vmatpush1.msra.mxu0 0.0
    %1409 = vmatprep.subr.mxu0 0.0
    %1410 = vmatpush1.msra.mxu0 0.0
    %1411 = vmatprep.subr.mxu0 0.0
    %1412 = vmatpush1.msra.mxu0 0.0
    %1413 = vmatprep.subr.mxu0 0.0
    %1414 = vmatpush1.msra.mxu0 0.0
    %1415 = vmatprep.subr.mxu0 0.0
    %1416 = vmatpush1.msra.mxu0 0.0
    %1417 = vmatprep.subr.mxu0 0.0
    %1418 = vmatpush1.msra.mxu0 0.0
    %1419 = vmatprep.subr.mxu0 0.0
    %1420 = vmatpush1.msra.mxu0 0.0
    %1421 = vmatprep.subr.mxu0 0.0
    %1422 = vmatpush1.msra.mxu0 0.0
    %1423 = vmatprep.subr.mxu0 0.0
    %1424 = vmatpush1.msra.mxu0 0.0
    %1425 = vmatprep.subr.mxu0 0.0
    %1426 = vmatpush1.msra.mxu0 0.0
    %1427 = vmatprep.subr.mxu0 0.0
    %1428 = vmatpush1.msra.mxu0 0.0
    %1429 = vmatprep.subr.mxu0 0.0
    %1430 = vmatpush1.msra.mxu0 0.0
    %1431 = vmatprep.subr.mxu0 0.0
    %1432 = vmatpush1.msra.mxu0 0.0
    %1433 = vmatprep.subr.mxu0 0.0
    %1434 = vmatpush1.msra.mxu0 0.0
    %1435 = vmatprep.subr.mxu0 0.0
    %1436 = vmatpush1.msra.mxu0 0.0
    %1437 = vmatprep.subr.mxu0 0.0
    %1438 = vmatpush1.msra.mxu0 0.0
    %1439 = vmatprep.subr.mxu0 0.0
    %1440 = vmatpush1.msra.mxu0 0.0
    %1441 = vmatprep.subr.mxu0 0.0
    %1442 = vmatpush1.msra.mxu0 0.0
    %1443 = vmatprep.subr.mxu0 0.0
    %1444 = vmatpush1.msra.mxu0 0.0
    %1445 = vmatprep.subr.mxu0 0.0
    %1446 = vmatpush1.msra.mxu0 0.0
    %1447 = vmatprep.subr.mxu0 0.0
    %1448 = vmatpush1.msra.mxu0 0.0
    %1449 = vmatprep.subr.mxu0 0.0
    %1450 = vmatpush1.msra.mxu0 0.0
    %1451 = vmatprep.mubr.f32.mxu0 0.0
    %1452 = vmatmul.mubr.f32.gmra.mrb[0].mxu0 %v1383
    %v1453 = vpop.f32.mrb[0].mxu0
    %v1454 = vadd.f32 %v1380, %v1453
    %v1455 = vpop.f32.mrb[0].mxu0
    %1456 = vdwg.mxu0
    %v1457 = vmax.f32 %v1454, 0.0
    %vm1458 = vcmask 9216
    %v1459 = vsel %vm1458, %v1457, -inf
    %1460 = vmax.xlane.f32.xlu0 %v1459
    %v1461 = vpop.xlane.xlu0 %1460
    %v1462 = vsub.f32 %v1457, %v1461
    %v1463 = vmul.f32 %v1462, 1.442695
    %v1464 = vpow.pop %v1463
    %v1465 = vsel %vm1458, %v1464, 0.0
    %1466 = vadd.xlane.f32.xlu0 %v1465
    %v1467 = vpop.xlane.xlu0 %1466
    %v1468 = vrcp.pop %v1467
    %v1469 = vmul.f32 %v1464, %v1468
    %1470 = vst [vmem:[%s3] sm:$0x3] 0.0
    %vm1471 = vcmask 115712
    %1472 = vst.msk [vmem:[%s3] sm:$0x3] %vm1471, %v1248
    %1474 = vrot.lane.b32.xlu0 %v1469, 15
    %v1475 = vpop.permute.xlu0 %1474
    %vm1477 = vcmask 132216
    %1478 = vst.msk [vmem:[%s3] sm:$0x3] %vm1477, %v1475
    // Predicated region
    $region22: #{model_forward.1} parent=1 // pred_check
      _
    $region23: #{model_forward.1} parent=1 // pred_check_branch
      %1480 = sbr.rel (0) target = $region25
    $region24: #{model_forward.1} parent=1 // pred_region
      _
    $region25: #{model_forward.1} parent=1 // pred_fallthru
      _
    // Predicated region
    $region26: #{model_forward.1} parent=1 // pred_check
      _
    $region27: #{model_forward.1} parent=1 // pred_check_branch
      %1482 = sbr.rel (0) target = $region29
    $region28: #{model_forward.1} parent=1 // pred_region
      _
    $region29: #{model_forward.1} parent=1 // pred_fallthru
      _
    %1483 = vsyncpa [#allocation3], 1
    %1484 = vsyncpa [#allocation4], 1

</llo_original>
